<compile_context>
chip_gen: v7x
topology: tpu7x:2x2x1
jax: 0.10.0
libtpu: 0.0.40
codegen_flags: <defaults>
</compile_context>

<pallas_src>
import jax
import jax.numpy as jnp
from jax.experimental import pallas as pl
from jax.experimental.pallas import tpu as pltpu


def _round_up(x, m):
    return (x + m - 1) // m * m


# x_other becomes VMEM-resident (single HBM read, reused by every dst tile)
# when its padded bf16 footprint is at or below this threshold.
_X_OTHER_RESIDENT_BYTES = 16 * 1024 * 1024


def make_plan(n_self, n_other, d_in, d_out, *, tm=512, tk=1024, force_stream=False):
    """Static tiling plan shared by adjacency prep, weight folding and the kernel call."""
    d_in_pad = _round_up(d_in + 1, 128)      # +1 all-ones column (bias / edge-norm-sum carrier)
    d_out_pad = _round_up(d_out, 128)        # lane-dense (unmasked) output stores
    # Big tiles amortize the ~0.35us per-grid-step overhead; clamp to problem size.
    tm = min(tm, _round_up(n_self, 128))
    tk = min(tk, _round_up(n_other, 128))
    n_self_pad = _round_up(n_self, tm)
    n_other_pad = _round_up(n_other, tk)
    resident = (not force_stream) and (n_other_pad * d_in_pad * 2 <= _X_OTHER_RESIDENT_BYTES)
    return dict(n_self=n_self, n_other=n_other, d_in=d_in, d_out=d_out,
                d_in_pad=d_in_pad, d_out_pad=d_out_pad,
                tm=tm, tk=tk, n_self_pad=n_self_pad, n_other_pad=n_other_pad,
                resident=resident)


def pad_adjacency(adj_norm, plan, dtype=jnp.bfloat16):
    """One-time per graph: zero-pad the normalized adjacency to tile multiples and cast.

    Hoisted out of ngcf_node_update -- NGCF reuses the same adjacency on every
    layer, so this full-matrix read/write is paid once, not per pallas_call.
    """
    n_dst, n_src = adj_norm.shape
    a = jnp.zeros((plan["n_self_pad"], plan["n_other_pad"]), jnp.float32)
    a = a.at[:n_dst, :n_src].set(adj_norm.astype(jnp.float32))
    # TODO(synk): for production-sparse recsys graphs, also build per-dst-tile
    # nonzero k-tile lists here and drive a scalar-prefetch data-dependent
    # adjacency index_map so all-zero tiles are neither DMA'd nor matmul'd.
    # TODO(synk): on v7x an fp8(e4m3) adjacency stream (int8 on v5e/v6e) would
    # halve the dominant HBM stream again; needs per-chip dispatch + revalidation.
    return a.astype(dtype)


def fold_weights(w1t, b1, w2t, b2, plan, dtype=jnp.bfloat16):
    """One-time per layer: fold (W1^T, b1) and (W2^T, b2) into two bias-carrying
    bf16 matrices of shape (d_in_pad, d_out_pad); the bias row sits at index d_in
    and is multiplied by the all-ones feature column (which carries 1+s / s)."""
    d_in, d_out = plan["d_in"], plan["d_out"]
    d_in_pad, d_out_pad = plan["d_in_pad"], plan["d_out_pad"]

    def fold(wt, b):
        w = jnp.zeros((d_in_pad, d_out_pad), jnp.float32)
        w = w.at[:d_in, :d_out].set(wt.astype(jnp.float32))
        w = w.at[d_in, :d_out].set(b.reshape(-1).astype(jnp.float32))
        return w.astype(dtype)

    return fold(w1t, b1), fold(w2t, b2)


def _make_kernel(tk, resident):
    def kernel(x_self_ref, x_other_ref, adj_ref, wtop_ref, wbot_ref, out_ref, agg_ref):
        """grid = (dst row tiles, K tiles over src nodes); K (last) axis is the reduction."""
        k = pl.program_id(1)

        @pl.when(k == 0)
        def _():
            agg_ref[...] = jnp.zeros_like(agg_ref)

        if resident:
            # x_other is a single VMEM-resident block; slice the current k chunk.
            start = pl.multiple_of(k * tk, 128)
            x_other = x_other_ref[pl.ds(start, tk), :]
        else:
            x_other = x_other_ref[...]

        # Neighbor aggregation on the MXU (bf16 x bf16 -> f32 accumulate).
        # Columns [0, d_in) accumulate sum_src norm * x_src; the all-ones column
        # accumulates s = sum of incident edge norms (carries the bias terms).
        agg_ref[...] += jnp.dot(adj_ref[...], x_other,
                                preferred_element_type=jnp.float32)

        @pl.when(k == pl.num_programs(1) - 1)
        def _():
            x_self = x_self_ref[...]             # f32, all-ones at column d_in
            agg = agg_ref[...]                   # f32 accumulator
            # Two bf16 MXU matmuls (no lane-concat temporary) replace W1, W2 and
            # both biases; the ones column yields (1+s)*b1 and s*b2 via the dots.
            lhs_top = (x_self + agg).astype(jnp.bfloat16)
            lhs_bot = (agg * x_self).astype(jnp.bfloat16)
            h = jnp.dot(lhs_top, wtop_ref[...], preferred_element_type=jnp.float32)
            h = h + jnp.dot(lhs_bot, wbot_ref[...], preferred_element_type=jnp.float32)
            # LeakyReLU(0.2)
            h = jnp.where(h > 0, h, 0.2 * h)
            # TODO(synk): nn.Dropout is identity in eval mode; training-mode RNG dropout not replicated.
            # F.normalize(h, dim=1, p=2) == h / max(||h||_2, 1e-12); rsqrt -> EUP slot.
            ss = jnp.sum(h * h, axis=1, keepdims=True)
            out_ref[...] = h * jax.lax.rsqrt(jnp.maximum(ss, 1e-24))

    return kernel


def ngcf_node_update(x_self, x_other, adj_padded, wtop, wbot, plan):
    """One node-type update of NGCFLayer.forward (messages + sum-agg + act + l2norm).

    adj_padded / wtop / wbot are the one-time-prepared bf16 arrays from
    pad_adjacency / fold_weights; features (per-layer activations) are padded here.
    """
    d_in, d_out = plan["d_in"], plan["d_out"]
    d_in_pad, d_out_pad = plan["d_in_pad"], plan["d_out_pad"]
    tm, tk = plan["tm"], plan["tk"]
    n_self_pad, n_other_pad = plan["n_self_pad"], plan["n_other_pad"]
    resident = plan["resident"]

    def pad_feat(x, n_pad, dtype):
        n = x.shape[0]
        xp = jnp.zeros((n_pad, d_in_pad), jnp.float32)
        xp = xp.at[:n, :d_in].set(x.astype(jnp.float32))
        xp = xp.at[:n, d_in].set(1.0)            # ones column
        return xp.astype(dtype)

    x_self_p = pad_feat(x_self, n_self_pad, jnp.float32)        # dst rows stay f32
    x_other_p = pad_feat(x_other, n_other_pad, jnp.bfloat16)    # src rows stream in bf16

    grid = (n_self_pad // tm, n_other_pad // tk)

    if resident:
        # Whole x_other stays in VMEM: constant index map -> DMA'd once, never refetched.
        x_other_spec = pl.BlockSpec((n_other_pad, d_in_pad), lambda i, k: (0, 0))
    else:
        x_other_spec = pl.BlockSpec((tk, d_in_pad), lambda i, k: (k, 0))

    out = pl.pallas_call(
        _make_kernel(tk, resident),
        out_shape=jax.ShapeDtypeStruct((n_self_pad, d_out_pad), jnp.float32),
        grid_spec=pltpu.PrefetchScalarGridSpec(
            num_scalar_prefetch=0,
            grid=grid,
            in_specs=[
                pl.BlockSpec((tm, d_in_pad), lambda i, k: (i, 0)),      # dst rows (f32)
                x_other_spec,                                            # src rows (bf16)
                pl.BlockSpec((tm, tk), lambda i, k: (i, k)),             # adjacency tile (bf16)
                pl.BlockSpec((d_in_pad, d_out_pad), lambda i, k: (0, 0)),  # W1^T + b1 (bf16, resident)
                pl.BlockSpec((d_in_pad, d_out_pad), lambda i, k: (0, 0)),  # W2^T + b2 (bf16, resident)
            ],
            out_specs=pl.BlockSpec((tm, d_out_pad), lambda i, k: (i, 0)),
            scratch_shapes=[pltpu.VMEM((tm, d_in_pad), jnp.float32)],    # agg accumulator
        ),
        compiler_params=pltpu.CompilerParams(
            dimension_semantics=("parallel", "arbitrary"),   # i axis shards across v7x's 2 TCs
            vmem_limit_bytes=48 * 1024 * 1024,
        ),
    )(x_self_p, x_other_p, adj_padded, wtop, wbot)
    return out[:plan["n_self"], :d_out]


def ref_node_update(x_self, x_other, adj, w1t, b1, w2t, b2):
    """Pure-JAX f32 reference of the same math (for correctness check)."""
    agg = adj @ x_other
    s = adj.sum(axis=1, keepdims=True)
    h = (x_self + agg) @ w1t + (1.0 + s) * b1 + (agg * x_self) @ w2t + s * b2
    h = jnp.where(h > 0, h, 0.2 * h)
    n = jnp.sqrt((h * h).sum(axis=1, keepdims=True))
    return h / jnp.maximum(n, 1e-12)


if __name__ == "__main__":
    key = jax.random.PRNGKey(0)
    n_users, n_items = 200, 300
    in_size, out_size = 48, 32

    k1, k2, k3, k4, k5, k6, k7 = jax.random.split(key, 7)
    x_user = jax.random.normal(k1, (n_users, in_size), jnp.float32)
    x_item = jax.random.normal(k2, (n_items, in_size), jnp.float32)

    # Bipartite graph + NGCF edge norms 1/sqrt(deg_u * deg_i) (the norm_dict).
    mask = (jax.random.uniform(k3, (n_users, n_items)) < 0.3).astype(jnp.float32)
    deg_u = jnp.maximum(mask.sum(axis=1, keepdims=True), 1.0)
    deg_i = jnp.maximum(mask.sum(axis=0, keepdims=True), 1.0)
    adj_ui = mask / jnp.sqrt(deg_u * deg_i)   # user <- item normalized adjacency
    adj_iu = adj_ui.T                         # item <- user

    # Xavier-uniform W1/W2 (as in __init__); biases nonzero here to exercise
    # the fused-bias path (module init is zero, forward math is param-agnostic).
    bound = (6.0 / (in_size + out_size)) ** 0.5
    w1t = jax.random.uniform(k4, (in_size, out_size), jnp.float32, -bound, bound)
    w2t = jax.random.uniform(k5, (in_size, out_size), jnp.float32, -bound, bound)
    b1 = 0.05 * jax.random.normal(k6, (1, out_size), jnp.float32)
    b2 = 0.05 * jax.random.normal(k7, (1, out_size), jnp.float32)

    # ---- one-time preprocessing (reused by every NGCF layer / both directions) ----
    plan_ui = make_plan(n_users, n_items, in_size, out_size)
    plan_iu = make_plan(n_items, n_users, in_size, out_size)
    adj_ui_p = pad_adjacency(adj_ui, plan_ui)
    adj_iu_p = pad_adjacency(adj_iu, plan_iu)
    wtop, wbot = fold_weights(w1t, b1, w2t, b2, plan_ui)   # d_in/d_out pads identical for both plans

    # ---- per-layer updates ----
    h_user = ngcf_node_update(x_user, x_item, adj_ui_p, wtop, wbot, plan_ui)
    h_item = ngcf_node_update(x_item, x_user, adj_iu_p, wtop, wbot, plan_iu)

    # Also exercise the streaming (non-resident x_other) fallback path.
    plan_ui_stream = make_plan(n_users, n_items, in_size, out_size, force_stream=True)
    h_user_s = ngcf_node_update(x_user, x_item, adj_ui_p, wtop, wbot, plan_ui_stream)

    jax.block_until_ready((h_user, h_item, h_user_s))

    ref_u = ref_node_update(x_user, x_item, adj_ui, w1t, b1, w2t, b2)
    ref_i = ref_node_update(x_item, x_user, adj_iu, w1t, b1, w2t, b2)
    # bf16 adjacency / feature / weight streams -> tolerance loosened vs f32 reference.
    err_u = float(jnp.abs(h_user - ref_u).max())
    err_i = float(jnp.abs(h_item - ref_i).max())
    err_s = float(jnp.abs(h_user_s - ref_u).max())
    assert jnp.allclose(h_user, ref_u, rtol=2e-2, atol=2e-2), err_u
    assert jnp.allclose(h_item, ref_i, rtol=2e-2, atol=2e-2), err_i
    assert jnp.allclose(h_user_s, ref_u, rtol=2e-2, atol=2e-2), err_s
    print("KERNEL_OK")
</pallas_src>

<mosaic_0001>
module attributes {stable_mosaic.version = 11 : i64} {
  func.func @kernel(%arg0: i32, %arg1: i32, %arg2: memref<256x128xf32, #tpu.memory_space<vmem>>, %arg3: memref<384x128xbf16, #tpu.memory_space<vmem>>, %arg4: memref<256x384xbf16, #tpu.memory_space<vmem>>, %arg5: memref<128x128xbf16, #tpu.memory_space<vmem>>, %arg6: memref<128x128xbf16, #tpu.memory_space<vmem>>, %arg7: memref<256x128xf32, #tpu.memory_space<vmem>>, %arg8: memref<256x128xf32, #tpu.memory_space<vmem>>) attributes {dimension_semantics = [#tpu.dimension_semantics<parallel>, #tpu.dimension_semantics<arbitrary>], iteration_bounds = array<i64: 1, 1>, scalar_prefetch = 0 : i64, scratch_operands = 1 : i64, tpu.core_type = #tpu.core_type<tc>, window_params = [{transform_indices = @transform_0, window_bounds = array<i64: 256, 128>}, {pipeline_mode = #tpu.pipeline_mode<synchronous>, transform_indices = @transform_1, window_bounds = array<i64: 384, 128>}, {transform_indices = @transform_2, window_bounds = array<i64: 256, 384>}, {pipeline_mode = #tpu.pipeline_mode<synchronous>, transform_indices = @transform_3, window_bounds = array<i64: 128, 128>}, {pipeline_mode = #tpu.pipeline_mode<synchronous>, transform_indices = @transform_4, window_bounds = array<i64: 128, 128>}, {transform_indices = @transform_5, window_bounds = array<i64: 256, 128>}]} {
    %c0_i32 = arith.constant 0 : i32
    %0 = arith.cmpi eq, %arg1, %c0_i32 : i32
    %1 = arith.extui %0 : i1 to i32
    %c0_i32_0 = arith.constant 0 : i32
    %2 = arith.cmpi ne, %1, %c0_i32_0 : i32
    scf.if %2 {
      %cst_9 = arith.constant 0.000000e+00 : f32
      %15 = vector.broadcast %cst_9 : f32 to vector<256x128xf32>
      %c0_10 = arith.constant 0 : index
      %c0_11 = arith.constant 0 : index
      %16 = vector.load %arg8[%c0_10, %c0_11] : memref<256x128xf32, #tpu.memory_space<vmem>>, vector<256x128xf32>
      tpu.vector_store %arg8[%c0_10, %c0_11], %15 {strides = array<i32>} : memref<256x128xf32, #tpu.memory_space<vmem>>, vector<256x128xf32>,
    } else {
    }
    %c384_i32 = arith.constant 384 : i32
    %3 = arith.muli %arg1, %c384_i32 : i32
    %4 = tpu.assume_multiple %3, 128 : i32
    %5 = arith.index_cast %4 : i32 to index
    %c0 = arith.constant 0 : index
    %6 = vector.load %arg3[%5, %c0] : memref<384x128xbf16, #tpu.memory_space<vmem>>, vector<384x128xbf16>
    %c0_1 = arith.constant 0 : index
    %c0_2 = arith.constant 0 : index
    %7 = vector.load %arg8[%c0_1, %c0_2] : memref<256x128xf32, #tpu.memory_space<vmem>>, vector<256x128xf32>
    %c0_3 = arith.constant 0 : index
    %c0_4 = arith.constant 0 : index
    %8 = vector.load %arg4[%c0_3, %c0_4] : memref<256x384xbf16, #tpu.memory_space<vmem>>, vector<256x384xbf16>
    %cst = arith.constant dense<0.000000e+00> : vector<256x128xf32>
    %9 = tpu.matmul %8, %6, %cst {dimension_numbers = #tpu.dot_dimension_numbers<[1], [0], [0], [1], [0, 0, 1, 1], [], []>} : vector<256x384xbf16>, vector<384x128xbf16>, vector<256x128xf32> -> vector<256x128xf32>
    %10 = arith.addf %7, %9 : vector<256x128xf32>
    %c0_5 = arith.constant 0 : index
    %c0_6 = arith.constant 0 : index
    %11 = vector.load %arg8[%c0_5, %c0_6] : memref<256x128xf32, #tpu.memory_space<vmem>>, vector<256x128xf32>
    tpu.vector_store %arg8[%c0_5, %c0_6], %10 {strides = array<i32>} : memref<256x128xf32, #tpu.memory_space<vmem>>, vector<256x128xf32>,
    %c0_i32_7 = arith.constant 0 : i32
    %12 = arith.cmpi eq, %arg1, %c0_i32_7 : i32
    %13 = arith.extui %12 : i1 to i32
    %c0_i32_8 = arith.constant 0 : i32
    %14 = arith.cmpi ne, %13, %c0_i32_8 : i32
    scf.if %14 {
      %c0_9 = arith.constant 0 : index
      %c0_10 = arith.constant 0 : index
      %15 = vector.load %arg2[%c0_9, %c0_10] : memref<256x128xf32, #tpu.memory_space<vmem>>, vector<256x128xf32>
      %c0_11 = arith.constant 0 : index
      %c0_12 = arith.constant 0 : index
      %16 = vector.load %arg8[%c0_11, %c0_12] : memref<256x128xf32, #tpu.memory_space<vmem>>, vector<256x128xf32>
      %17 = arith.addf %15, %16 : vector<256x128xf32>
      %18 = arith.truncf %17 : vector<256x128xf32> to vector<256x128xbf16>
      %19 = arith.mulf %16, %15 : vector<256x128xf32>
      %20 = arith.truncf %19 : vector<256x128xf32> to vector<256x128xbf16>
      %c0_13 = arith.constant 0 : index
      %c0_14 = arith.constant 0 : index
      %21 = vector.load %arg5[%c0_13, %c0_14] : memref<128x128xbf16, #tpu.memory_space<vmem>>, vector<128x128xbf16>
      %cst_15 = arith.constant dense<0.000000e+00> : vector<256x128xf32>
      %22 = tpu.matmul %18, %21, %cst_15 {dimension_numbers = #tpu.dot_dimension_numbers<[1], [0], [0], [1], [0, 0, 1, 1], [], []>} : vector<256x128xbf16>, vector<128x128xbf16>, vector<256x128xf32> -> vector<256x128xf32>
      %c0_16 = arith.constant 0 : index
      %c0_17 = arith.constant 0 : index
      %23 = vector.load %arg6[%c0_16, %c0_17] : memref<128x128xbf16, #tpu.memory_space<vmem>>, vector<128x128xbf16>
      %cst_18 = arith.constant dense<0.000000e+00> : vector<256x128xf32>
      %24 = tpu.matmul %20, %23, %cst_18 {dimension_numbers = #tpu.dot_dimension_numbers<[1], [0], [0], [1], [0, 0, 1, 1], [], []>} : vector<256x128xbf16>, vector<128x128xbf16>, vector<256x128xf32> -> vector<256x128xf32>
      %25 = arith.addf %22, %24 : vector<256x128xf32>
      %cst_19 = arith.constant 0.000000e+00 : f32
      %26 = vector.broadcast %cst_19 : f32 to vector<256x128xf32>
      %27 = arith.cmpf ogt, %25, %26 : vector<256x128xf32>
      %cst_20 = arith.constant 2.000000e-01 : f32
      %28 = vector.broadcast %cst_20 : f32 to vector<256x128xf32>
      %29 = arith.mulf %28, %25 : vector<256x128xf32>
      %30 = arith.select %27, %25, %29 : vector<256x128xi1>, vector<256x128xf32>
      %31 = arith.mulf %30, %30 : vector<256x128xf32>
      %cst_21 = arith.constant dense<0.000000e+00> : vector<256xf32>
      %32 = vector.multi_reduction <add>, %31, %cst_21 [1] : vector<256x128xf32> to vector<256xf32>
      %33 = vector.shape_cast %32 : vector<256xf32> to vector<256x1xf32>
      %cst_22 = arith.constant 1.000000e-24 : f32
      %34 = vector.broadcast %cst_22 : f32 to vector<256x1xf32>
      %35 = arith.maximumf %33, %34 : vector<256x1xf32>
      %36 = math.rsqrt %35 : vector<256x1xf32>
      %37 = vector.broadcast %36 : vector<256x1xf32> to vector<256x128xf32>
      %38 = arith.mulf %30, %37 : vector<256x128xf32>
      %c0_23 = arith.constant 0 : index
      %c0_24 = arith.constant 0 : index
      %39 = vector.load %arg7[%c0_23, %c0_24] : memref<256x128xf32, #tpu.memory_space<vmem>>, vector<256x128xf32>
      tpu.vector_store %arg7[%c0_23, %c0_24], %38 {strides = array<i32>} : memref<256x128xf32, #tpu.memory_space<vmem>>, vector<256x128xf32>,
    } else {
    }
    return
  }
  func.func @transform_0(%arg0: i32, %arg1: i32) -> (i32, i32) {
    %c0_i32 = arith.constant 0 : i32
    %c0_i32_0 = arith.constant 0 : i32
    return %arg0, %c0_i32 : i32, i32
  }
  func.func @transform_1(%arg0: i32, %arg1: i32) -> (i32, i32) {
    %c0_i32 = arith.constant 0 : i32
    %c0_i32_0 = arith.constant 0 : i32
    %c0_i32_1 = arith.constant 0 : i32
    return %c0_i32, %c0_i32_0 : i32, i32
  }
  func.func @transform_2(%arg0: i32, %arg1: i32) -> (i32, i32) {
    %c0_i32 = arith.constant 0 : i32
    return %arg0, %arg1 : i32, i32
  }
  func.func @transform_3(%arg0: i32, %arg1: i32) -> (i32, i32) {
    %c0_i32 = arith.constant 0 : i32
    %c0_i32_0 = arith.constant 0 : i32
    %c0_i32_1 = arith.constant 0 : i32
    return %c0_i32, %c0_i32_0 : i32, i32
  }
  func.func @transform_4(%arg0: i32, %arg1: i32) -> (i32, i32) {
    %c0_i32 = arith.constant 0 : i32
    %c0_i32_0 = arith.constant 0 : i32
    %c0_i32_1 = arith.constant 0 : i32
    return %c0_i32, %c0_i32_0 : i32, i32
  }
  func.func @transform_5(%arg0: i32, %arg1: i32) -> (i32, i32) {
    %c0_i32 = arith.constant 0 : i32
    %c0_i32_0 = arith.constant 0 : i32
    return %arg0, %c0_i32 : i32, i32
  }
}

</mosaic_0001>

<llo_original>
// kernel: tpu_custom_call.1
$region0: #{tpu_custom_call.1}
  #allocation0 [shape = 'u32[]', space=smem, size = 0x4, offset = 0x4, fixed_abs, tag = 'smem constant byte address 0x4 - core index']
  #allocation1 [shape = 'u32[144,128]{1,0:T(1,128)}', space=vmem, size = 0x12000, scoped, tag = 'internal scratch']
  #allocation2 [shape = 'f32[256,128]{1,0:T(8,128)}', space=vmem, size = 0x20000, scoped, tag = 'scratch operand']
  %s0 = inlined_call_operand.hbm [shape: f32[256,128], index: 0, kind: input, shape index: {}]
  %s1 = inlined_call_operand.hbm [shape: bf16[384,128], index: 1, kind: input, shape index: {}]
  %s2 = inlined_call_operand.hbm [shape: bf16[256,384], index: 2, kind: input, shape index: {}]
  %s3 = inlined_call_operand.hbm [shape: bf16[128,128], index: 3, kind: input, shape index: {}]
  %s4 = inlined_call_operand.hbm [shape: bf16[128,128], index: 4, kind: input, shape index: {}]
  %s5 = inlined_call_operand.hbm [shape: f32[256,128], index: 5, kind: output, shape index: {}]
  %s6 = sld [smem:[#allocation0]]
  $region58: #{tpu_custom_call.1} parent=0
    _
  %s8 = ssub.s32 1, %s6
  %s9 = scalar_select 0, %s8, %s6
  $region1: #{tpu_custom_call.1} parent=0
    #allocation3 [shape = 'u8[131072]{0}', space=vmem, size = 0x20000, scoped, tag = 'input window, operand 0, single buffered']
    #allocation4 [shape = 's32[1]{0}', space=sflag, size = 0x4, scoped, tag = 'scoped memory for tpu_custom_call.1']
    #allocation5 [shape = 's32[1]{0}', space=sflag, size = 0x4, scoped, tag = 'scoped memory for tpu_custom_call.1']
    #allocation6 [shape = 'u8[98304]{0}', space=vmem, size = 0x18000, scoped, tag = 'input window, operand 1, single buffered']
    #allocation7 [shape = 's32[1]{0}', space=sflag, size = 0x4, scoped, tag = 'scoped memory for tpu_custom_call.1']
    #allocation8 [shape = 'u8[196608]{0}', space=vmem, size = 0x30000, scoped, tag = 'input window, operand 2, single buffered']
    #allocation9 [shape = 'u8[32768]{0}', space=vmem, size = 0x8000, scoped, tag = 'input window, operand 3, single buffered']
    #allocation10 [shape = 's32[1]{0}', space=sflag, size = 0x4, scoped, tag = 'scoped memory for tpu_custom_call.1']
    #allocation11 [shape = 'u8[32768]{0}', space=vmem, size = 0x8000, scoped, tag = 'input window, operand 4, single buffered']
    #allocation12 [shape = 'u8[131072]{0}', space=vmem, size = 0x20000, scoped, tag = 'output window, operand 0, single buffered']
    %10 = vsyncpa [#allocation4], 0
    %11 = vsyncpa [#allocation7], 0
    %12 = vsyncpa [#allocation10], 0
    %13 = vsyncpa [#allocation5], 0
    // Predicated region
    $region2: #{tpu_custom_call.1} parent=1 // pred_check
      _
    $region3: #{tpu_custom_call.1} parent=1 // pred_check_branch
      %15 = sbr.rel (0) target = $region5
    $region4: #{tpu_custom_call.1} parent=1 // pred_region
      %s17 = ssub.s32 4096, 4096
      %18 = vsyncadd [#allocation4], %s17
      %s19 = sshll.u32 [#allocation3], 4
      %s20 = int_to_ptr.vmem [resolvable:$true] %s19
      %25 = dma.hbm_to_vmem [thread:$0]  %s0, 4096, %s20, [#allocation4], 128, 128, 8
    $region5: #{tpu_custom_call.1} parent=1 // pred_fallthru
      _
    // Predicated region
    $region6: #{tpu_custom_call.1} parent=1 // pred_check
      _
    $region7: #{tpu_custom_call.1} parent=1 // pred_check_branch
      %27 = sbr.rel (0) target = $region9
    $region8: #{tpu_custom_call.1} parent=1 // pred_region
      %s29 = ssub.s32 3072, 3072
      %30 = vsyncadd [#allocation7], %s29
      %s31 = sshll.u32 [#allocation6], 4
      %s32 = int_to_ptr.vmem [resolvable:$true] %s31
      %37 = dma.hbm_to_vmem [thread:$0]  %s1, 3072, %s32, [#allocation7], 64, 64, 4
    $region9: #{tpu_custom_call.1} parent=1 // pred_fallthru
      _
    // Predicated region
    $region10: #{tpu_custom_call.1} parent=1 // pred_check
      _
    $region11: #{tpu_custom_call.1} parent=1 // pred_check_branch
      %39 = sbr.rel (0) target = $region13
    $region12: #{tpu_custom_call.1} parent=1 // pred_region
      %s41 = ssub.s32 6144, 6144
      %42 = vsyncadd [#allocation7], %s41
      %s43 = sshll.u32 [#allocation8], 4
      %s44 = int_to_ptr.vmem [resolvable:$true] %s43
      %49 = dma.hbm_to_vmem [thread:$0]  %s2, 6144, %s44, [#allocation7], 192, 192, 12
    $region13: #{tpu_custom_call.1} parent=1 // pred_fallthru
      _
    // Predicated region
    $region14: #{tpu_custom_call.1} parent=1 // pred_check
      _
    $region15: #{tpu_custom_call.1} parent=1 // pred_check_branch
      %51 = sbr.rel (0) target = $region17
    $region16: #{tpu_custom_call.1} parent=1 // pred_region
      %s53 = ssub.s32 1024, 1024
      %54 = vsyncadd [#allocation10], %s53
      %s55 = sshll.u32 [#allocation9], 4
      %s56 = int_to_ptr.vmem [resolvable:$true] %s55
      %61 = dma.hbm_to_vmem [thread:$0]  %s3, 1024, %s56, [#allocation10], 64, 64, 4
    $region17: #{tpu_custom_call.1} parent=1 // pred_fallthru
      _
    // Predicated region
    $region18: #{tpu_custom_call.1} parent=1 // pred_check
      _
    $region19: #{tpu_custom_call.1} parent=1 // pred_check_branch
      %63 = sbr.rel (0) target = $region21
    $region20: #{tpu_custom_call.1} parent=1 // pred_region
      %s65 = ssub.s32 1024, 1024
      %66 = vsyncadd [#allocation10], %s65
      %s67 = sshll.u32 [#allocation11], 4
      %s68 = int_to_ptr.vmem [resolvable:$true] %s67
      %73 = dma.hbm_to_vmem [thread:$0]  %s4, 1024, %s68, [#allocation10], 64, 64, 4
    $region21: #{tpu_custom_call.1} parent=1 // pred_fallthru
      _
    // Predicated region
    $region22: #{tpu_custom_call.1} parent=1 // pred_check
      _
    $region23: #{tpu_custom_call.1} parent=1 // pred_check_branch
      %75 = sbr.rel (0) target = $region25
    $region24: #{tpu_custom_call.1} parent=1 // pred_region
      %76 = dma.done [#allocation4], 4096
    $region25: #{tpu_custom_call.1} parent=1 // pred_fallthru
      _
    // Predicated region
    $region26: #{tpu_custom_call.1} parent=1 // pred_check
      _
    $region27: #{tpu_custom_call.1} parent=1 // pred_check_branch
      %78 = sbr.rel (0) target = $region29
    $region28: #{tpu_custom_call.1} parent=1 // pred_region
      %79 = dma.done [#allocation7], 3072
    $region29: #{tpu_custom_call.1} parent=1 // pred_fallthru
      _
    // Predicated region
    $region30: #{tpu_custom_call.1} parent=1 // pred_check
      _
    $region31: #{tpu_custom_call.1} parent=1 // pred_check_branch
      %81 = sbr.rel (0) target = $region33
    $region32: #{tpu_custom_call.1} parent=1 // pred_region
      %82 = dma.done [#allocation7], 6144
    $region33: #{tpu_custom_call.1} parent=1 // pred_fallthru
      _
    // Predicated region
    $region34: #{tpu_custom_call.1} parent=1 // pred_check
      _
    $region35: #{tpu_custom_call.1} parent=1 // pred_check_branch
      %84 = sbr.rel (0) target = $region37
    $region36: #{tpu_custom_call.1} parent=1 // pred_region
      %85 = dma.done [#allocation10], 1024
    $region37: #{tpu_custom_call.1} parent=1 // pred_fallthru
      _
    // Predicated region
    $region38: #{tpu_custom_call.1} parent=1 // pred_check
      _
    $region39: #{tpu_custom_call.1} parent=1 // pred_check_branch
      %87 = sbr.rel (0) target = $region41
    $region40: #{tpu_custom_call.1} parent=1 // pred_region
      %88 = dma.done [#allocation10], 1024
    $region41: #{tpu_custom_call.1} parent=1 // pred_fallthru
      _
    %p90 = scmp.eq.s32.totalorder 0, 0
    // Predicated region
    $region42: #{tpu_custom_call.1} parent=1 // pred_check
      %p91 = pneg %p90
    $region43: #{tpu_custom_call.1} parent=1 // pred_check_branch
      %93 = sbr.rel (%p91) target = $region45
    $region44: #{tpu_custom_call.1} parent=1 // pred_region
      %94 = vst [vmem:[#allocation2] sm:$0xff] 0.0
      %95 = vst [vmem:[#allocation2 + $0x8] sm:$0xff] 0.0
      %96 = vst [vmem:[#allocation2 + $0x10] sm:$0xff] 0.0
      %97 = vst [vmem:[#allocation2 + $0x18] sm:$0xff] 0.0
      %98 = vst [vmem:[#allocation2 + $0x20] sm:$0xff] 0.0
      %99 = vst [vmem:[#allocation2 + $0x28] sm:$0xff] 0.0
      %100 = vst [vmem:[#allocation2 + $0x30] sm:$0xff] 0.0
      %101 = vst [vmem:[#allocation2 + $0x38] sm:$0xff] 0.0
      %102 = vst [vmem:[#allocation2 + $0x40] sm:$0xff] 0.0
      %103 = vst [vmem:[#allocation2 + $0x48] sm:$0xff] 0.0
      %104 = vst [vmem:[#allocation2 + $0x50] sm:$0xff] 0.0
      %105 = vst [vmem:[#allocation2 + $0x58] sm:$0xff] 0.0
      %106 = vst [vmem:[#allocation2 + $0x60] sm:$0xff] 0.0
      %107 = vst [vmem:[#allocation2 + $0x68] sm:$0xff] 0.0
      %108 = vst [vmem:[#allocation2 + $0x70] sm:$0xff] 0.0
      %109 = vst [vmem:[#allocation2 + $0x78] sm:$0xff] 0.0
      %110 = vst [vmem:[#allocation2 + $0x80] sm:$0xff] 0.0
      %111 = vst [vmem:[#allocation2 + $0x88] sm:$0xff] 0.0
      %112 = vst [vmem:[#allocation2 + $0x90] sm:$0xff] 0.0
      %113 = vst [vmem:[#allocation2 + $0x98] sm:$0xff] 0.0
      %114 = vst [vmem:[#allocation2 + $0xa0] sm:$0xff] 0.0
      %115 = vst [vmem:[#allocation2 + $0xa8] sm:$0xff] 0.0
      %116 = vst [vmem:[#allocation2 + $0xb0] sm:$0xff] 0.0
      %117 = vst [vmem:[#allocation2 + $0xb8] sm:$0xff] 0.0
      %118 = vst [vmem:[#allocation2 + $0xc0] sm:$0xff] 0.0
      %119 = vst [vmem:[#allocation2 + $0xc8] sm:$0xff] 0.0
      %120 = vst [vmem:[#allocation2 + $0xd0] sm:$0xff] 0.0
      %121 = vst [vmem:[#allocation2 + $0xd8] sm:$0xff] 0.0
      %122 = vst [vmem:[#allocation2 + $0xe0] sm:$0xff] 0.0
      %123 = vst [vmem:[#allocation2 + $0xe8] sm:$0xff] 0.0
      %124 = vst [vmem:[#allocation2 + $0xf0] sm:$0xff] 0.0
      %125 = vst [vmem:[#allocation2 + $0xf8] sm:$0xff] 0.0
    $region45: #{tpu_custom_call.1} parent=1 // pred_fallthru
      _
    %s126 = smul.u32 0, 384
    %s127 = sshra.s32 %s126, 3
    %s128 = sand.u32 %s126, 7
    %s129 = smul.addr %s127, 4
    %s130 = scalar_lea.vmem [#allocation6], %s129
    %v131 = vld [vmem:[%s130] sm:$0xf]
    %v132 = vld [vmem:[%s130 + $0x4] sm:$0xf]
    %v133 = vld [vmem:[%s130 + $0x8] sm:$0xf]
    %v134 = vld [vmem:[%s130 + $0xc] sm:$0xf]
    %v135 = vld [vmem:[%s130 + $0x10] sm:$0xf]
    %v136 = vld [vmem:[%s130 + $0x14] sm:$0xf]
    %v137 = vld [vmem:[%s130 + $0x18] sm:$0xf]
    %v138 = vld [vmem:[%s130 + $0x1c] sm:$0xf]
    %v139 = vld [vmem:[%s130 + $0x20] sm:$0xf]
    %v140 = vld [vmem:[%s130 + $0x24] sm:$0xf]
    %v141 = vld [vmem:[%s130 + $0x28] sm:$0xf]
    %v142 = vld [vmem:[%s130 + $0x2c] sm:$0xf]
    %v143 = vld [vmem:[%s130 + $0x30] sm:$0xf]
    %v144 = vld [vmem:[%s130 + $0x34] sm:$0xf]
    %v145 = vld [vmem:[%s130 + $0x38] sm:$0xf]
    %v146 = vld [vmem:[%s130 + $0x3c] sm:$0xf]
    %v147 = vld [vmem:[%s130 + $0x40] sm:$0xf]
    %v148 = vld [vmem:[%s130 + $0x44] sm:$0xf]
    %v149 = vld [vmem:[%s130 + $0x48] sm:$0xf]
    %v150 = vld [vmem:[%s130 + $0x4c] sm:$0xf]
    %v151 = vld [vmem:[%s130 + $0x50] sm:$0xf]
    %v152 = vld [vmem:[%s130 + $0x54] sm:$0xf]
    %v153 = vld [vmem:[%s130 + $0x58] sm:$0xf]
    %v154 = vld [vmem:[%s130 + $0x5c] sm:$0xf]
    %v155 = vld [vmem:[%s130 + $0x60] sm:$0xf]
    %v156 = vld [vmem:[%s130 + $0x64] sm:$0xf]
    %v157 = vld [vmem:[%s130 + $0x68] sm:$0xf]
    %v158 = vld [vmem:[%s130 + $0x6c] sm:$0xf]
    %v159 = vld [vmem:[%s130 + $0x70] sm:$0xf]
    %v160 = vld [vmem:[%s130 + $0x74] sm:$0xf]
    %v161 = vld [vmem:[%s130 + $0x78] sm:$0xf]
    %v162 = vld [vmem:[%s130 + $0x7c] sm:$0xf]
    %v163 = vld [vmem:[%s130 + $0x80] sm:$0xf]
    %v164 = vld [vmem:[%s130 + $0x84] sm:$0xf]
    %v165 = vld [vmem:[%s130 + $0x88] sm:$0xf]
    %v166 = vld [vmem:[%s130 + $0x8c] sm:$0xf]
    %v167 = vld [vmem:[%s130 + $0x90] sm:$0xf]
    %v168 = vld [vmem:[%s130 + $0x94] sm:$0xf]
    %v169 = vld [vmem:[%s130 + $0x98] sm:$0xf]
    %v170 = vld [vmem:[%s130 + $0x9c] sm:$0xf]
    %v171 = vld [vmem:[%s130 + $0xa0] sm:$0xf]
    %v172 = vld [vmem:[%s130 + $0xa4] sm:$0xf]
    %v173 = vld [vmem:[%s130 + $0xa8] sm:$0xf]
    %v174 = vld [vmem:[%s130 + $0xac] sm:$0xf]
    %v175 = vld [vmem:[%s130 + $0xb0] sm:$0xf]
    %v176 = vld [vmem:[%s130 + $0xb4] sm:$0xf]
    %v177 = vld [vmem:[%s130 + $0xb8] sm:$0xf]
    %v178 = vld [vmem:[%s130 + $0xbc] sm:$0xf]
    %v179 = vld [vmem:[#allocation2] sm:$0xff]
    %v180 = vld [vmem:[#allocation2 + $0x8] sm:$0xff]
    %v181 = vld [vmem:[#allocation2 + $0x10] sm:$0xff]
    %v182 = vld [vmem:[#allocation2 + $0x18] sm:$0xff]
    %v183 = vld [vmem:[#allocation2 + $0x20] sm:$0xff]
    %v184 = vld [vmem:[#allocation2 + $0x28] sm:$0xff]
    %v185 = vld [vmem:[#allocation2 + $0x30] sm:$0xff]
    %v186 = vld [vmem:[#allocation2 + $0x38] sm:$0xff]
    %v187 = vld [vmem:[#allocation2 + $0x40] sm:$0xff]
    %v188 = vld [vmem:[#allocation2 + $0x48] sm:$0xff]
    %v189 = vld [vmem:[#allocation2 + $0x50] sm:$0xff]
    %v190 = vld [vmem:[#allocation2 + $0x58] sm:$0xff]
    %v191 = vld [vmem:[#allocation2 + $0x60] sm:$0xff]
    %v192 = vld [vmem:[#allocation2 + $0x68] sm:$0xff]
    %v193 = vld [vmem:[#allocation2 + $0x70] sm:$0xff]
    %v194 = vld [vmem:[#allocation2 + $0x78] sm:$0xff]
    %v195 = vld [vmem:[#allocation2 + $0x80] sm:$0xff]
    %v196 = vld [vmem:[#allocation2 + $0x88] sm:$0xff]
    %v197 = vld [vmem:[#allocation2 + $0x90] sm:$0xff]
    %v198 = vld [vmem:[#allocation2 + $0x98] sm:$0xff]
    %v199 = vld [vmem:[#allocation2 + $0xa0] sm:$0xff]
    %v200 = vld [vmem:[#allocation2 + $0xa8] sm:$0xff]
    %v201 = vld [vmem:[#allocation2 + $0xb0] sm:$0xff]
    %v202 = vld [vmem:[#allocation2 + $0xb8] sm:$0xff]
    %v203 = vld [vmem:[#allocation2 + $0xc0] sm:$0xff]
    %v204 = vld [vmem:[#allocation2 + $0xc8] sm:$0xff]
    %v205 = vld [vmem:[#allocation2 + $0xd0] sm:$0xff]
    %v206 = vld [vmem:[#allocation2 + $0xd8] sm:$0xff]
    %v207 = vld [vmem:[#allocation2 + $0xe0] sm:$0xff]
    %v208 = vld [vmem:[#allocation2 + $0xe8] sm:$0xff]
    %v209 = vld [vmem:[#allocation2 + $0xf0] sm:$0xff]
    %v210 = vld [vmem:[#allocation2 + $0xf8] sm:$0xff]
    %v211 = vld [vmem:[#allocation8] sm:$0xff]
    %v212 = vld [vmem:[#allocation8 + $0x8] sm:$0xf]
    %v213 = vld [vmem:[#allocation8 + $0xc] sm:$0xff]
    %v214 = vld [vmem:[#allocation8 + $0x14] sm:$0xf]
    %v215 = vld [vmem:[#allocation8 + $0x18] sm:$0xff]
    %v216 = vld [vmem:[#allocation8 + $0x20] sm:$0xf]
    %v217 = vld [vmem:[#allocation8 + $0x24] sm:$0xff]
    %v218 = vld [vmem:[#allocation8 + $0x2c] sm:$0xf]
    %v219 = vld [vmem:[#allocation8 + $0x30] sm:$0xff]
    %v220 = vld [vmem:[#allocation8 + $0x38] sm:$0xf]
    %v221 = vld [vmem:[#allocation8 + $0x3c] sm:$0xff]
    %v222 = vld [vmem:[#allocation8 + $0x44] sm:$0xf]
    %v223 = vld [vmem:[#allocation8 + $0x48] sm:$0xff]
    %v224 = vld [vmem:[#allocation8 + $0x50] sm:$0xf]
    %v225 = vld [vmem:[#allocation8 + $0x54] sm:$0xff]
    %v226 = vld [vmem:[#allocation8 + $0x5c] sm:$0xf]
    %v227 = vld [vmem:[#allocation8 + $0x60] sm:$0xff]
    %v228 = vld [vmem:[#allocation8 + $0x68] sm:$0xf]
    %v229 = vld [vmem:[#allocation8 + $0x6c] sm:$0xff]
    %v230 = vld [vmem:[#allocation8 + $0x74] sm:$0xf]
    %v231 = vld [vmem:[#allocation8 + $0x78] sm:$0xff]
    %v232 = vld [vmem:[#allocation8 + $0x80] sm:$0xf]
    %v233 = vld [vmem:[#allocation8 + $0x84] sm:$0xff]
    %v234 = vld [vmem:[#allocation8 + $0x8c] sm:$0xf]
    %v235 = vld [vmem:[#allocation8 + $0x90] sm:$0xff]
    %v236 = vld [vmem:[#allocation8 + $0x98] sm:$0xf]
    %v237 = vld [vmem:[#allocation8 + $0x9c] sm:$0xff]
    %v238 = vld [vmem:[#allocation8 + $0xa4] sm:$0xf]
    %v239 = vld [vmem:[#allocation8 + $0xa8] sm:$0xff]
    %v240 = vld [vmem:[#allocation8 + $0xb0] sm:$0xf]
    %v241 = vld [vmem:[#allocation8 + $0xb4] sm:$0xff]
    %v242 = vld [vmem:[#allocation8 + $0xbc] sm:$0xf]
    %v243 = vld [vmem:[#allocation8 + $0xc0] sm:$0xff]
    %v244 = vld [vmem:[#allocation8 + $0xc8] sm:$0xf]
    %v245 = vld [vmem:[#allocation8 + $0xcc] sm:$0xff]
    %v246 = vld [vmem:[#allocation8 + $0xd4] sm:$0xf]
    %v247 = vld [vmem:[#allocation8 + $0xd8] sm:$0xff]
    %v248 = vld [vmem:[#allocation8 + $0xe0] sm:$0xf]
    %v249 = vld [vmem:[#allocation8 + $0xe4] sm:$0xff]
    %v250 = vld [vmem:[#allocation8 + $0xec] sm:$0xf]
    %v251 = vld [vmem:[#allocation8 + $0xf0] sm:$0xff]
    %v252 = vld [vmem:[#allocation8 + $0xf8] sm:$0xf]
    %v253 = vld [vmem:[#allocation8 + $0xfc] sm:$0xff]
    %v254 = vld [vmem:[#allocation8 + $0x104] sm:$0xf]
    %v255 = vld [vmem:[#allocation8 + $0x108] sm:$0xff]
    %v256 = vld [vmem:[#allocation8 + $0x110] sm:$0xf]
    %v257 = vld [vmem:[#allocation8 + $0x114] sm:$0xff]
    %v258 = vld [vmem:[#allocation8 + $0x11c] sm:$0xf]
    %v259 = vld [vmem:[#allocation8 + $0x120] sm:$0xff]
    %v260 = vld [vmem:[#allocation8 + $0x128] sm:$0xf]
    %v261 = vld [vmem:[#allocation8 + $0x12c] sm:$0xff]
    %v262 = vld [vmem:[#allocation8 + $0x134] sm:$0xf]
    %v263 = vld [vmem:[#allocation8 + $0x138] sm:$0xff]
    %v264 = vld [vmem:[#allocation8 + $0x140] sm:$0xf]
    %v265 = vld [vmem:[#allocation8 + $0x144] sm:$0xff]
    %v266 = vld [vmem:[#allocation8 + $0x14c] sm:$0xf]
    %v267 = vld [vmem:[#allocation8 + $0x150] sm:$0xff]
    %v268 = vld [vmem:[#allocation8 + $0x158] sm:$0xf]
    %v269 = vld [vmem:[#allocation8 + $0x15c] sm:$0xff]
    %v270 = vld [vmem:[#allocation8 + $0x164] sm:$0xf]
    %v271 = vld [vmem:[#allocation8 + $0x168] sm:$0xff]
    %v272 = vld [vmem:[#allocation8 + $0x170] sm:$0xf]
    %v273 = vld [vmem:[#allocation8 + $0x174] sm:$0xff]
    %v274 = vld [vmem:[#allocation8 + $0x17c] sm:$0xf]
    %v339 = vunpack.c.l.b16 %v211
    %v340 = vunpack.c.h.b16 %v211
    %v341 = vunpack.c.l.b16 %v212
    %v342 = vunpack.c.l.b16 %v213
    %v343 = vunpack.c.h.b16 %v213
    %v344 = vunpack.c.l.b16 %v214
    %v345 = vunpack.c.l.b16 %v215
    %v346 = vunpack.c.h.b16 %v215
    %v347 = vunpack.c.l.b16 %v216
    %v348 = vunpack.c.l.b16 %v217
    %v349 = vunpack.c.h.b16 %v217
    %v350 = vunpack.c.l.b16 %v218
    %v351 = vunpack.c.l.b16 %v219
    %v352 = vunpack.c.h.b16 %v219
    %v353 = vunpack.c.l.b16 %v220
    %v354 = vunpack.c.l.b16 %v221
    %v355 = vunpack.c.h.b16 %v221
    %v356 = vunpack.c.l.b16 %v222
    %v357 = vunpack.c.l.b16 %v223
    %v358 = vunpack.c.h.b16 %v223
    %v359 = vunpack.c.l.b16 %v224
    %v360 = vunpack.c.l.b16 %v225
    %v361 = vunpack.c.h.b16 %v225
    %v362 = vunpack.c.l.b16 %v226
    %v363 = vunpack.c.l.b16 %v227
    %v364 = vunpack.c.h.b16 %v227
    %v365 = vunpack.c.l.b16 %v228
    %v366 = vunpack.c.l.b16 %v229
    %v367 = vunpack.c.h.b16 %v229
    %v368 = vunpack.c.l.b16 %v230
    %v369 = vunpack.c.l.b16 %v231
    %v370 = vunpack.c.h.b16 %v231
    %v371 = vunpack.c.l.b16 %v232
    %v372 = vunpack.c.l.b16 %v233
    %v373 = vunpack.c.h.b16 %v233
    %v374 = vunpack.c.l.b16 %v234
    %v375 = vunpack.c.l.b16 %v235
    %v376 = vunpack.c.h.b16 %v235
    %v377 = vunpack.c.l.b16 %v236
    %v378 = vunpack.c.l.b16 %v237
    %v379 = vunpack.c.h.b16 %v237
    %v380 = vunpack.c.l.b16 %v238
    %v381 = vunpack.c.l.b16 %v239
    %v382 = vunpack.c.h.b16 %v239
    %v383 = vunpack.c.l.b16 %v240
    %v384 = vunpack.c.l.b16 %v241
    %v385 = vunpack.c.h.b16 %v241
    %v386 = vunpack.c.l.b16 %v242
    %v387 = vunpack.c.l.b16 %v243
    %v388 = vunpack.c.h.b16 %v243
    %v389 = vunpack.c.l.b16 %v244
    %v390 = vunpack.c.l.b16 %v245
    %v391 = vunpack.c.h.b16 %v245
    %v392 = vunpack.c.l.b16 %v246
    %v393 = vunpack.c.l.b16 %v247
    %v394 = vunpack.c.h.b16 %v247
    %v395 = vunpack.c.l.b16 %v248
    %v396 = vunpack.c.l.b16 %v249
    %v397 = vunpack.c.h.b16 %v249
    %v398 = vunpack.c.l.b16 %v250
    %v399 = vunpack.c.l.b16 %v251
    %v400 = vunpack.c.h.b16 %v251
    %v401 = vunpack.c.l.b16 %v252
    %v402 = vunpack.c.l.b16 %v253
    %v403 = vunpack.c.h.b16 %v253
    %v404 = vunpack.c.l.b16 %v254
    %v405 = vunpack.c.l.b16 %v255
    %v406 = vunpack.c.h.b16 %v255
    %v407 = vunpack.c.l.b16 %v256
    %v408 = vunpack.c.l.b16 %v257
    %v409 = vunpack.c.h.b16 %v257
    %v410 = vunpack.c.l.b16 %v258
    %v411 = vunpack.c.l.b16 %v259
    %v412 = vunpack.c.h.b16 %v259
    %v413 = vunpack.c.l.b16 %v260
    %v414 = vunpack.c.l.b16 %v261
    %v415 = vunpack.c.h.b16 %v261
    %v416 = vunpack.c.l.b16 %v262
    %v417 = vunpack.c.l.b16 %v263
    %v418 = vunpack.c.h.b16 %v263
    %v419 = vunpack.c.l.b16 %v264
    %v420 = vunpack.c.l.b16 %v265
    %v421 = vunpack.c.h.b16 %v265
    %v422 = vunpack.c.l.b16 %v266
    %v423 = vunpack.c.l.b16 %v267
    %v424 = vunpack.c.h.b16 %v267
    %v425 = vunpack.c.l.b16 %v268
    %v426 = vunpack.c.l.b16 %v269
    %v427 = vunpack.c.h.b16 %v269
    %v428 = vunpack.c.l.b16 %v270
    %v429 = vunpack.c.l.b16 %v271
    %v430 = vunpack.c.h.b16 %v271
    %v431 = vunpack.c.l.b16 %v272
    %v432 = vunpack.c.l.b16 %v273
    %v433 = vunpack.c.h.b16 %v273
    %v434 = vunpack.c.l.b16 %v274
    %v435 = vpack.c.b16 %v342, %v339
    %v436 = vpack.c.b16 %v343, %v340
    %v437 = vpack.c.b16 %v344, %v341
    %v438 = vpack.c.b16 %v348, %v345
    %v439 = vpack.c.b16 %v349, %v346
    %v440 = vpack.c.b16 %v350, %v347
    %v441 = vpack.c.b16 %v354, %v351
    %v442 = vpack.c.b16 %v355, %v352
    %v443 = vpack.c.b16 %v356, %v353
    %v444 = vpack.c.b16 %v360, %v357
    %v445 = vpack.c.b16 %v361, %v358
    %v446 = vpack.c.b16 %v362, %v359
    %v447 = vpack.c.b16 %v366, %v363
    %v448 = vpack.c.b16 %v367, %v364
    %v449 = vpack.c.b16 %v368, %v365
    %v450 = vpack.c.b16 %v372, %v369
    %v451 = vpack.c.b16 %v373, %v370
    %v452 = vpack.c.b16 %v374, %v371
    %v453 = vpack.c.b16 %v378, %v375
    %v454 = vpack.c.b16 %v379, %v376
    %v455 = vpack.c.b16 %v380, %v377
    %v456 = vpack.c.b16 %v384, %v381
    %v457 = vpack.c.b16 %v385, %v382
    %v458 = vpack.c.b16 %v386, %v383
    %v459 = vpack.c.b16 %v390, %v387
    %v460 = vpack.c.b16 %v391, %v388
    %v461 = vpack.c.b16 %v392, %v389
    %v462 = vpack.c.b16 %v396, %v393
    %v463 = vpack.c.b16 %v397, %v394
    %v464 = vpack.c.b16 %v398, %v395
    %v465 = vpack.c.b16 %v402, %v399
    %v466 = vpack.c.b16 %v403, %v400
    %v467 = vpack.c.b16 %v404, %v401
    %v468 = vpack.c.b16 %v408, %v405
    %v469 = vpack.c.b16 %v409, %v406
    %v470 = vpack.c.b16 %v410, %v407
    %v471 = vpack.c.b16 %v414, %v411
    %v472 = vpack.c.b16 %v415, %v412
    %v473 = vpack.c.b16 %v416, %v413
    %v474 = vpack.c.b16 %v420, %v417
    %v475 = vpack.c.b16 %v421, %v418
    %v476 = vpack.c.b16 %v422, %v419
    %v477 = vpack.c.b16 %v426, %v423
    %v478 = vpack.c.b16 %v427, %v424
    %v479 = vpack.c.b16 %v428, %v425
    %v480 = vpack.c.b16 %v432, %v429
    %v481 = vpack.c.b16 %v433, %v430
    %v482 = vpack.c.b16 %v434, %v431
    %v579 = vunpack.c.l.b16 %v131
    %v580 = vunpack.c.l.b16 %v132
    %v581 = vunpack.c.l.b16 %v133
    %v582 = vunpack.c.l.b16 %v134
    %v583 = vunpack.c.l.b16 %v135
    %v584 = vunpack.c.l.b16 %v136
    %v585 = vunpack.c.l.b16 %v137
    %v586 = vunpack.c.l.b16 %v138
    %v587 = vunpack.c.l.b16 %v139
    %v588 = vunpack.c.l.b16 %v140
    %v589 = vunpack.c.l.b16 %v141
    %v590 = vunpack.c.l.b16 %v142
    %v591 = vunpack.c.l.b16 %v143
    %v592 = vunpack.c.l.b16 %v144
    %v593 = vunpack.c.l.b16 %v145
    %v594 = vunpack.c.l.b16 %v146
    %v595 = vunpack.c.l.b16 %v147
    %v596 = vunpack.c.l.b16 %v148
    %v597 = vunpack.c.l.b16 %v149
    %v598 = vunpack.c.l.b16 %v150
    %v599 = vunpack.c.l.b16 %v151
    %v600 = vunpack.c.l.b16 %v152
    %v601 = vunpack.c.l.b16 %v153
    %v602 = vunpack.c.l.b16 %v154
    %v603 = vunpack.c.l.b16 %v155
    %v604 = vunpack.c.l.b16 %v156
    %v605 = vunpack.c.l.b16 %v157
    %v606 = vunpack.c.l.b16 %v158
    %v607 = vunpack.c.l.b16 %v159
    %v608 = vunpack.c.l.b16 %v160
    %v609 = vunpack.c.l.b16 %v161
    %v610 = vunpack.c.l.b16 %v162
    %v611 = vunpack.c.l.b16 %v163
    %v612 = vunpack.c.l.b16 %v164
    %v613 = vunpack.c.l.b16 %v165
    %v614 = vunpack.c.l.b16 %v166
    %v615 = vunpack.c.l.b16 %v167
    %v616 = vunpack.c.l.b16 %v168
    %v617 = vunpack.c.l.b16 %v169
    %v618 = vunpack.c.l.b16 %v170
    %v619 = vunpack.c.l.b16 %v171
    %v620 = vunpack.c.l.b16 %v172
    %v621 = vunpack.c.l.b16 %v173
    %v622 = vunpack.c.l.b16 %v174
    %v623 = vunpack.c.l.b16 %v175
    %v624 = vunpack.c.l.b16 %v176
    %v625 = vunpack.c.l.b16 %v177
    %v626 = vunpack.c.l.b16 %v178
    %v627 = vpack.c.b16 %v580, %v579
    %v628 = vpack.c.b16 %v582, %v581
    %v629 = vpack.c.b16 %v584, %v583
    %v630 = vpack.c.b16 %v586, %v585
    %v631 = vpack.c.b16 %v588, %v587
    %v632 = vpack.c.b16 %v590, %v589
    %v633 = vpack.c.b16 %v592, %v591
    %v634 = vpack.c.b16 %v594, %v593
    %v635 = vpack.c.b16 %v596, %v595
    %v636 = vpack.c.b16 %v598, %v597
    %v637 = vpack.c.b16 %v600, %v599
    %v638 = vpack.c.b16 %v602, %v601
    %v639 = vpack.c.b16 %v604, %v603
    %v640 = vpack.c.b16 %v606, %v605
    %v641 = vpack.c.b16 %v608, %v607
    %v642 = vpack.c.b16 %v610, %v609
    %v643 = vpack.c.b16 %v612, %v611
    %v644 = vpack.c.b16 %v614, %v613
    %v645 = vpack.c.b16 %v616, %v615
    %v646 = vpack.c.b16 %v618, %v617
    %v647 = vpack.c.b16 %v620, %v619
    %v648 = vpack.c.b16 %v622, %v621
    %v649 = vpack.c.b16 %v624, %v623
    %v650 = vpack.c.b16 %v626, %v625
    %675 = vmatprep.subr.bf16.mxu0 0
    %676 = vmatpush1.bf16.msra.mxu0 %v627
    %677 = vmatprep.subr.bf16.mxu0 0
    %678 = vmatpush1.bf16.msra.mxu0 %v628
    %679 = vmatprep.subr.bf16.mxu0 0
    %680 = vmatpush1.bf16.msra.mxu0 %v629
    %681 = vmatprep.subr.bf16.mxu0 0
    %682 = vmatpush1.bf16.msra.mxu0 %v630
    %683 = vmatprep.subr.bf16.mxu0 0
    %684 = vmatpush1.bf16.msra.mxu0 %v631
    %685 = vmatprep.subr.bf16.mxu0 0
    %686 = vmatpush1.bf16.msra.mxu0 %v632
    %687 = vmatprep.subr.bf16.mxu0 0
    %688 = vmatpush1.bf16.msra.mxu0 %v633
    %689 = vmatprep.subr.bf16.mxu0 0
    %690 = vmatpush1.bf16.msra.mxu0 %v634
    %691 = vmatprep.subr.bf16.mxu0 0
    %692 = vmatpush1.bf16.msra.mxu0 %v635
    %693 = vmatprep.subr.bf16.mxu0 0
    %694 = vmatpush1.bf16.msra.mxu0 %v636
    %695 = vmatprep.subr.bf16.mxu0 0
    %696 = vmatpush1.bf16.msra.mxu0 %v637
    %697 = vmatprep.subr.bf16.mxu0 0
    %698 = vmatpush1.bf16.msra.mxu0 %v638
    %699 = vmatprep.subr.bf16.mxu0 0
    %700 = vmatpush1.bf16.msra.mxu0 %v639
    %701 = vmatprep.subr.bf16.mxu0 0
    %702 = vmatpush1.bf16.msra.mxu0 %v640
    %703 = vmatprep.subr.bf16.mxu0 0
    %704 = vmatpush1.bf16.msra.mxu0 %v641
    %705 = vmatprep.subr.bf16.mxu0 0
    %706 = vmatpush1.bf16.msra.mxu0 %v642
    %707 = vmatprep.mubr.bf16.mxu0 %v436
    %708 = vmatmul.mubr.bf16.gmra.mrb[0].mxu0 %v435
    %v709 = vpop.f32.mrb[0].mxu0
    %v710 = vadd.f32 0.0, %v709
    %v711 = vpop.f32.mrb[0].mxu0
    %v712 = vpop.f32.mrb[0].mxu0
    %v713 = vadd.f32 0.0, %v712
    %v714 = vpop.f32.mrb[0].mxu0
    %715 = vmatprep.mubr.bf16.mxu0 %v439
    %716 = vmatmul.mubr.bf16.gmra.mrb[0].mxu0 %v438
    %v717 = vpop.f32.mrb[0].mxu0
    %v718 = vadd.f32 0.0, %v717
    %v719 = vpop.f32.mrb[0].mxu0
    %v720 = vpop.f32.mrb[0].mxu0
    %v721 = vadd.f32 0.0, %v720
    %v722 = vpop.f32.mrb[0].mxu0
    %723 = vmatprep.mubr.bf16.mxu0 %v442
    %724 = vmatmul.mubr.bf16.gmra.mrb[0].mxu0 %v441
    %v725 = vpop.f32.mrb[0].mxu0
    %v726 = vadd.f32 0.0, %v725
    %v727 = vpop.f32.mrb[0].mxu0
    %v728 = vpop.f32.mrb[0].mxu0
    %v729 = vadd.f32 0.0, %v728
    %v730 = vpop.f32.mrb[0].mxu0
    %731 = vmatprep.mubr.bf16.mxu0 %v445
    %732 = vmatmul.mubr.bf16.gmra.mrb[0].mxu0 %v444
    %v733 = vpop.f32.mrb[0].mxu0
    %v734 = vadd.f32 0.0, %v733
    %v735 = vpop.f32.mrb[0].mxu0
    %v736 = vpop.f32.mrb[0].mxu0
    %v737 = vadd.f32 0.0, %v736
    %v738 = vpop.f32.mrb[0].mxu0
    %739 = vmatprep.mubr.bf16.mxu0 %v448
    %740 = vmatmul.mubr.bf16.gmra.mrb[0].mxu0 %v447
    %v741 = vpop.f32.mrb[0].mxu0
    %v742 = vadd.f32 0.0, %v741
    %v743 = vpop.f32.mrb[0].mxu0
    %v744 = vpop.f32.mrb[0].mxu0
    %v745 = vadd.f32 0.0, %v744
    %v746 = vpop.f32.mrb[0].mxu0
    %747 = vmatprep.mubr.bf16.mxu0 %v451
    %748 = vmatmul.mubr.bf16.gmra.mrb[0].mxu0 %v450
    %v749 = vpop.f32.mrb[0].mxu0
    %v750 = vadd.f32 0.0, %v749
    %v751 = vpop.f32.mrb[0].mxu0
    %v752 = vpop.f32.mrb[0].mxu0
    %v753 = vadd.f32 0.0, %v752
    %v754 = vpop.f32.mrb[0].mxu0
    %755 = vmatprep.mubr.bf16.mxu0 %v454
    %756 = vmatmul.mubr.bf16.gmra.mrb[0].mxu0 %v453
    %v757 = vpop.f32.mrb[0].mxu0
    %v758 = vadd.f32 0.0, %v757
    %v759 = vpop.f32.mrb[0].mxu0
    %v760 = vpop.f32.mrb[0].mxu0
    %v761 = vadd.f32 0.0, %v760
    %v762 = vpop.f32.mrb[0].mxu0
    %763 = vmatprep.mubr.bf16.mxu0 %v457
    %764 = vmatmul.mubr.bf16.gmra.mrb[0].mxu0 %v456
    %v765 = vpop.f32.mrb[0].mxu0
    %v766 = vadd.f32 0.0, %v765
    %v767 = vpop.f32.mrb[0].mxu0
    %v768 = vpop.f32.mrb[0].mxu0
    %v769 = vadd.f32 0.0, %v768
    %v770 = vpop.f32.mrb[0].mxu0
    %771 = vmatprep.mubr.bf16.mxu0 %v460
    %772 = vmatmul.mubr.bf16.gmra.mrb[0].mxu0 %v459
    %v773 = vpop.f32.mrb[0].mxu0
    %v774 = vadd.f32 0.0, %v773
    %v775 = vpop.f32.mrb[0].mxu0
    %v776 = vpop.f32.mrb[0].mxu0
    %v777 = vadd.f32 0.0, %v776
    %v778 = vpop.f32.mrb[0].mxu0
    %779 = vmatprep.mubr.bf16.mxu0 %v463
    %780 = vmatmul.mubr.bf16.gmra.mrb[0].mxu0 %v462
    %v781 = vpop.f32.mrb[0].mxu0
    %v782 = vadd.f32 0.0, %v781
    %v783 = vpop.f32.mrb[0].mxu0
    %v784 = vpop.f32.mrb[0].mxu0
    %v785 = vadd.f32 0.0, %v784
    %v786 = vpop.f32.mrb[0].mxu0
    %787 = vmatprep.mubr.bf16.mxu0 %v466
    %788 = vmatmul.mubr.bf16.gmra.mrb[0].mxu0 %v465
    %v789 = vpop.f32.mrb[0].mxu0
    %v790 = vadd.f32 0.0, %v789
    %v791 = vpop.f32.mrb[0].mxu0
    %v792 = vpop.f32.mrb[0].mxu0
    %v793 = vadd.f32 0.0, %v792
    %v794 = vpop.f32.mrb[0].mxu0
    %795 = vmatprep.mubr.bf16.mxu0 %v469
    %796 = vmatmul.mubr.bf16.gmra.mrb[0].mxu0 %v468
    %v797 = vpop.f32.mrb[0].mxu0
    %v798 = vadd.f32 0.0, %v797
    %v799 = vpop.f32.mrb[0].mxu0
    %v800 = vpop.f32.mrb[0].mxu0
    %v801 = vadd.f32 0.0, %v800
    %v802 = vpop.f32.mrb[0].mxu0
    %803 = vmatprep.mubr.bf16.mxu0 %v472
    %804 = vmatmul.mubr.bf16.gmra.mrb[0].mxu0 %v471
    %v805 = vpop.f32.mrb[0].mxu0
    %v806 = vadd.f32 0.0, %v805
    %v807 = vpop.f32.mrb[0].mxu0
    %v808 = vpop.f32.mrb[0].mxu0
    %v809 = vadd.f32 0.0, %v808
    %v810 = vpop.f32.mrb[0].mxu0
    %811 = vmatprep.mubr.bf16.mxu0 %v475
    %812 = vmatmul.mubr.bf16.gmra.mrb[0].mxu0 %v474
    %v813 = vpop.f32.mrb[0].mxu0
    %v814 = vadd.f32 0.0, %v813
    %v815 = vpop.f32.mrb[0].mxu0
    %v816 = vpop.f32.mrb[0].mxu0
    %v817 = vadd.f32 0.0, %v816
    %v818 = vpop.f32.mrb[0].mxu0
    %819 = vmatprep.mubr.bf16.mxu0 %v478
    %820 = vmatmul.mubr.bf16.gmra.mrb[0].mxu0 %v477
    %v821 = vpop.f32.mrb[0].mxu0
    %v822 = vadd.f32 0.0, %v821
    %v823 = vpop.f32.mrb[0].mxu0
    %v824 = vpop.f32.mrb[0].mxu0
    %v825 = vadd.f32 0.0, %v824
    %v826 = vpop.f32.mrb[0].mxu0
    %827 = vmatprep.mubr.bf16.mxu0 %v481
    %828 = vmatmul.mubr.bf16.gmra.mrb[0].mxu0 %v480
    %v829 = vpop.f32.mrb[0].mxu0
    %v830 = vadd.f32 0.0, %v829
    %v831 = vpop.f32.mrb[0].mxu0
    %v832 = vpop.f32.mrb[0].mxu0
    %v833 = vadd.f32 0.0, %v832
    %v834 = vpop.f32.mrb[0].mxu0
    %835 = vdwg.mxu0
    %836 = vmatprep.subr.bf16.mxu0 0
    %837 = vmatpush1.bf16.msra.mxu0 %v643
    %838 = vmatprep.subr.bf16.mxu0 0
    %839 = vmatpush1.bf16.msra.mxu0 %v644
    %840 = vmatprep.subr.bf16.mxu0 0
    %841 = vmatpush1.bf16.msra.mxu0 %v645
    %842 = vmatprep.subr.bf16.mxu0 0
    %843 = vmatpush1.bf16.msra.mxu0 %v646
    %844 = vmatprep.subr.bf16.mxu0 0
    %845 = vmatpush1.bf16.msra.mxu0 %v647
    %846 = vmatprep.subr.bf16.mxu0 0
    %847 = vmatpush1.bf16.msra.mxu0 %v648
    %848 = vmatprep.subr.bf16.mxu0 0
    %849 = vmatpush1.bf16.msra.mxu0 %v649
    %850 = vmatprep.subr.bf16.mxu0 0
    %851 = vmatpush1.bf16.msra.mxu0 %v650
    %852 = vmatprep.subr.bf16.mxu0 0
    %853 = vmatpush1.bf16.msra.mxu0 0
    %854 = vmatprep.subr.bf16.mxu0 0
    %855 = vmatpush1.bf16.msra.mxu0 0
    %856 = vmatprep.subr.bf16.mxu0 0
    %857 = vmatpush1.bf16.msra.mxu0 0
    %858 = vmatprep.subr.bf16.mxu0 0
    %859 = vmatpush1.bf16.msra.mxu0 0
    %860 = vmatprep.subr.bf16.mxu0 0
    %861 = vmatpush1.bf16.msra.mxu0 0
    %862 = vmatprep.subr.bf16.mxu0 0
    %863 = vmatpush1.bf16.msra.mxu0 0
    %864 = vmatprep.subr.bf16.mxu0 0
    %865 = vmatpush1.bf16.msra.mxu0 0
    %866 = vmatprep.subr.bf16.mxu0 0
    %867 = vmatpush1.bf16.msra.mxu0 0
    %868 = vmatprep.mubr.bf16.mxu0 0
    %869 = vmatmul.mubr.bf16.gmra.mrb[0].mxu0 %v437
    %v870 = vpop.f32.mrb[0].mxu0
    %v871 = vadd.f32 %v710, %v870
    %v872 = vpop.f32.mrb[0].mxu0
    %v873 = vpop.f32.mrb[0].mxu0
    %v874 = vadd.f32 %v713, %v873
    %v875 = vpop.f32.mrb[0].mxu0
    %876 = vmatprep.mubr.bf16.mxu0 0
    %877 = vmatmul.mubr.bf16.gmra.mrb[0].mxu0 %v440
    %v878 = vpop.f32.mrb[0].mxu0
    %v879 = vadd.f32 %v718, %v878
    %v880 = vpop.f32.mrb[0].mxu0
    %v881 = vpop.f32.mrb[0].mxu0
    %v882 = vadd.f32 %v721, %v881
    %v883 = vpop.f32.mrb[0].mxu0
    %884 = vmatprep.mubr.bf16.mxu0 0
    %885 = vmatmul.mubr.bf16.gmra.mrb[0].mxu0 %v443
    %v886 = vpop.f32.mrb[0].mxu0
    %v887 = vadd.f32 %v726, %v886
    %v888 = vpop.f32.mrb[0].mxu0
    %v889 = vpop.f32.mrb[0].mxu0
    %v890 = vadd.f32 %v729, %v889
    %v891 = vpop.f32.mrb[0].mxu0
    %892 = vmatprep.mubr.bf16.mxu0 0
    %893 = vmatmul.mubr.bf16.gmra.mrb[0].mxu0 %v446
    %v894 = vpop.f32.mrb[0].mxu0
    %v895 = vadd.f32 %v734, %v894
    %v896 = vpop.f32.mrb[0].mxu0
    %v897 = vpop.f32.mrb[0].mxu0
    %v898 = vadd.f32 %v737, %v897
    %v899 = vpop.f32.mrb[0].mxu0
    %900 = vmatprep.mubr.bf16.mxu0 0
    %901 = vmatmul.mubr.bf16.gmra.mrb[0].mxu0 %v449
    %v902 = vpop.f32.mrb[0].mxu0
    %v903 = vadd.f32 %v742, %v902
    %v904 = vpop.f32.mrb[0].mxu0
    %v905 = vpop.f32.mrb[0].mxu0
    %v906 = vadd.f32 %v745, %v905
    %v907 = vpop.f32.mrb[0].mxu0
    %908 = vmatprep.mubr.bf16.mxu0 0
    %909 = vmatmul.mubr.bf16.gmra.mrb[0].mxu0 %v452
    %v910 = vpop.f32.mrb[0].mxu0
    %v911 = vadd.f32 %v750, %v910
    %v912 = vpop.f32.mrb[0].mxu0
    %v913 = vpop.f32.mrb[0].mxu0
    %v914 = vadd.f32 %v753, %v913
    %v915 = vpop.f32.mrb[0].mxu0
    %916 = vmatprep.mubr.bf16.mxu0 0
    %917 = vmatmul.mubr.bf16.gmra.mrb[0].mxu0 %v455
    %v918 = vpop.f32.mrb[0].mxu0
    %v919 = vadd.f32 %v758, %v918
    %v920 = vpop.f32.mrb[0].mxu0
    %v921 = vpop.f32.mrb[0].mxu0
    %v922 = vadd.f32 %v761, %v921
    %v923 = vpop.f32.mrb[0].mxu0
    %924 = vmatprep.mubr.bf16.mxu0 0
    %925 = vmatmul.mubr.bf16.gmra.mrb[0].mxu0 %v458
    %v926 = vpop.f32.mrb[0].mxu0
    %v927 = vadd.f32 %v766, %v926
    %v928 = vpop.f32.mrb[0].mxu0
    %v929 = vpop.f32.mrb[0].mxu0
    %v930 = vadd.f32 %v769, %v929
    %v931 = vpop.f32.mrb[0].mxu0
    %932 = vmatprep.mubr.bf16.mxu0 0
    %933 = vmatmul.mubr.bf16.gmra.mrb[0].mxu0 %v461
    %v934 = vpop.f32.mrb[0].mxu0
    %v935 = vadd.f32 %v774, %v934
    %v936 = vpop.f32.mrb[0].mxu0
    %v937 = vpop.f32.mrb[0].mxu0
    %v938 = vadd.f32 %v777, %v937
    %v939 = vpop.f32.mrb[0].mxu0
    %940 = vmatprep.mubr.bf16.mxu0 0
    %941 = vmatmul.mubr.bf16.gmra.mrb[0].mxu0 %v464
    %v942 = vpop.f32.mrb[0].mxu0
    %v943 = vadd.f32 %v782, %v942
    %v944 = vpop.f32.mrb[0].mxu0
    %v945 = vpop.f32.mrb[0].mxu0
    %v946 = vadd.f32 %v785, %v945
    %v947 = vpop.f32.mrb[0].mxu0
    %948 = vmatprep.mubr.bf16.mxu0 0
    %949 = vmatmul.mubr.bf16.gmra.mrb[0].mxu0 %v467
    %v950 = vpop.f32.mrb[0].mxu0
    %v951 = vadd.f32 %v790, %v950
    %v952 = vpop.f32.mrb[0].mxu0
    %v953 = vpop.f32.mrb[0].mxu0
    %v954 = vadd.f32 %v793, %v953
    %v955 = vpop.f32.mrb[0].mxu0
    %956 = vmatprep.mubr.bf16.mxu0 0
    %957 = vmatmul.mubr.bf16.gmra.mrb[0].mxu0 %v470
    %v958 = vpop.f32.mrb[0].mxu0
    %v959 = vadd.f32 %v798, %v958
    %v960 = vpop.f32.mrb[0].mxu0
    %v961 = vpop.f32.mrb[0].mxu0
    %v962 = vadd.f32 %v801, %v961
    %v963 = vpop.f32.mrb[0].mxu0
    %964 = vmatprep.mubr.bf16.mxu0 0
    %965 = vmatmul.mubr.bf16.gmra.mrb[0].mxu0 %v473
    %v966 = vpop.f32.mrb[0].mxu0
    %v967 = vadd.f32 %v806, %v966
    %v968 = vpop.f32.mrb[0].mxu0
    %v969 = vpop.f32.mrb[0].mxu0
    %v970 = vadd.f32 %v809, %v969
    %v971 = vpop.f32.mrb[0].mxu0
    %972 = vmatprep.mubr.bf16.mxu0 0
    %973 = vmatmul.mubr.bf16.gmra.mrb[0].mxu0 %v476
    %v974 = vpop.f32.mrb[0].mxu0
    %v975 = vadd.f32 %v814, %v974
    %v976 = vpop.f32.mrb[0].mxu0
    %v977 = vpop.f32.mrb[0].mxu0
    %v978 = vadd.f32 %v817, %v977
    %v979 = vpop.f32.mrb[0].mxu0
    %980 = vmatprep.mubr.bf16.mxu0 0
    %981 = vmatmul.mubr.bf16.gmra.mrb[0].mxu0 %v479
    %v982 = vpop.f32.mrb[0].mxu0
    %v983 = vadd.f32 %v822, %v982
    %v984 = vpop.f32.mrb[0].mxu0
    %v985 = vpop.f32.mrb[0].mxu0
    %v986 = vadd.f32 %v825, %v985
    %v987 = vpop.f32.mrb[0].mxu0
    %988 = vmatprep.mubr.bf16.mxu0 0
    %989 = vmatmul.mubr.bf16.gmra.mrb[0].mxu0 %v482
    %v990 = vpop.f32.mrb[0].mxu0
    %v991 = vadd.f32 %v830, %v990
    %v992 = vpop.f32.mrb[0].mxu0
    %v993 = vpop.f32.mrb[0].mxu0
    %v994 = vadd.f32 %v833, %v993
    %v995 = vpop.f32.mrb[0].mxu0
    %996 = vdwg.mxu0
    %v997 = vadd.f32 %v179, %v871
    %v998 = vadd.f32 %v180, %v874
    %v999 = vadd.f32 %v181, %v879
    %v1000 = vadd.f32 %v182, %v882
    %v1001 = vadd.f32 %v183, %v887
    %v1002 = vadd.f32 %v184, %v890
    %v1003 = vadd.f32 %v185, %v895
    %v1004 = vadd.f32 %v186, %v898
    %v1005 = vadd.f32 %v187, %v903
    %v1006 = vadd.f32 %v188, %v906
    %v1007 = vadd.f32 %v189, %v911
    %v1008 = vadd.f32 %v190, %v914
    %v1009 = vadd.f32 %v191, %v919
    %v1010 = vadd.f32 %v192, %v922
    %v1011 = vadd.f32 %v193, %v927
    %v1012 = vadd.f32 %v194, %v930
    %v1013 = vadd.f32 %v195, %v935
    %v1014 = vadd.f32 %v196, %v938
    %v1015 = vadd.f32 %v197, %v943
    %v1016 = vadd.f32 %v198, %v946
    %v1017 = vadd.f32 %v199, %v951
    %v1018 = vadd.f32 %v200, %v954
    %v1019 = vadd.f32 %v201, %v959
    %v1020 = vadd.f32 %v202, %v962
    %v1021 = vadd.f32 %v203, %v967
    %v1022 = vadd.f32 %v204, %v970
    %v1023 = vadd.f32 %v205, %v975
    %v1024 = vadd.f32 %v206, %v978
    %v1025 = vadd.f32 %v207, %v983
    %v1026 = vadd.f32 %v208, %v986
    %v1027 = vadd.f32 %v209, %v991
    %v1028 = vadd.f32 %v210, %v994
    %1029 = vst [vmem:[#allocation2] sm:$0xff] %v997
    %1030 = vst [vmem:[#allocation2 + $0x8] sm:$0xff] %v998
    %1031 = vst [vmem:[#allocation2 + $0x10] sm:$0xff] %v999
    %1032 = vst [vmem:[#allocation2 + $0x18] sm:$0xff] %v1000
    %1033 = vst [vmem:[#allocation2 + $0x20] sm:$0xff] %v1001
    %1034 = vst [vmem:[#allocation2 + $0x28] sm:$0xff] %v1002
    %1035 = vst [vmem:[#allocation2 + $0x30] sm:$0xff] %v1003
    %1036 = vst [vmem:[#allocation2 + $0x38] sm:$0xff] %v1004
    %1037 = vst [vmem:[#allocation2 + $0x40] sm:$0xff] %v1005
    %1038 = vst [vmem:[#allocation2 + $0x48] sm:$0xff] %v1006
    %1039 = vst [vmem:[#allocation2 + $0x50] sm:$0xff] %v1007
    %1040 = vst [vmem:[#allocation2 + $0x58] sm:$0xff] %v1008
    %1041 = vst [vmem:[#allocation2 + $0x60] sm:$0xff] %v1009
    %1042 = vst [vmem:[#allocation2 + $0x68] sm:$0xff] %v1010
    %1043 = vst [vmem:[#allocation2 + $0x70] sm:$0xff] %v1011
    %1044 = vst [vmem:[#allocation2 + $0x78] sm:$0xff] %v1012
    %1045 = vst [vmem:[#allocation2 + $0x80] sm:$0xff] %v1013
    %1046 = vst [vmem:[#allocation2 + $0x88] sm:$0xff] %v1014
    %1047 = vst [vmem:[#allocation2 + $0x90] sm:$0xff] %v1015
    %1048 = vst [vmem:[#allocation2 + $0x98] sm:$0xff] %v1016
    %1049 = vst [vmem:[#allocation2 + $0xa0] sm:$0xff] %v1017
    %1050 = vst [vmem:[#allocation2 + $0xa8] sm:$0xff] %v1018
    %1051 = vst [vmem:[#allocation2 + $0xb0] sm:$0xff] %v1019
    %1052 = vst [vmem:[#allocation2 + $0xb8] sm:$0xff] %v1020
    %1053 = vst [vmem:[#allocation2 + $0xc0] sm:$0xff] %v1021
    %1054 = vst [vmem:[#allocation2 + $0xc8] sm:$0xff] %v1022
    %1055 = vst [vmem:[#allocation2 + $0xd0] sm:$0xff] %v1023
    %1056 = vst [vmem:[#allocation2 + $0xd8] sm:$0xff] %v1024
    %1057 = vst [vmem:[#allocation2 + $0xe0] sm:$0xff] %v1025
    %1058 = vst [vmem:[#allocation2 + $0xe8] sm:$0xff] %v1026
    %1059 = vst [vmem:[#allocation2 + $0xf0] sm:$0xff] %v1027
    %1060 = vst [vmem:[#allocation2 + $0xf8] sm:$0xff] %v1028
    // Predicated region
    $region46: #{tpu_custom_call.1} parent=1 // pred_check
      %p1061 = pneg %p90
    $region47: #{tpu_custom_call.1} parent=1 // pred_check_branch
      %1063 = sbr.rel (%p1061) target = $region49
    $region48: #{tpu_custom_call.1} parent=1 // pred_region
      %v1064 = vld [vmem:[#allocation3] sm:$0xff]
      %v1065 = vld [vmem:[#allocation3 + $0x8] sm:$0xff]
      %v1066 = vld [vmem:[#allocation3 + $0x10] sm:$0xff]
      %v1067 = vld [vmem:[#allocation3 + $0x18] sm:$0xff]
      %v1068 = vld [vmem:[#allocation3 + $0x20] sm:$0xff]
      %v1069 = vld [vmem:[#allocation3 + $0x28] sm:$0xff]
      %v1070 = vld [vmem:[#allocation3 + $0x30] sm:$0xff]
      %v1071 = vld [vmem:[#allocation3 + $0x38] sm:$0xff]
      %v1072 = vld [vmem:[#allocation3 + $0x40] sm:$0xff]
      %v1073 = vld [vmem:[#allocation3 + $0x48] sm:$0xff]
      %v1074 = vld [vmem:[#allocation3 + $0x50] sm:$0xff]
      %v1075 = vld [vmem:[#allocation3 + $0x58] sm:$0xff]
      %v1076 = vld [vmem:[#allocation3 + $0x60] sm:$0xff]
      %v1077 = vld [vmem:[#allocation3 + $0x68] sm:$0xff]
      %v1078 = vld [vmem:[#allocation3 + $0x70] sm:$0xff]
      %v1079 = vld [vmem:[#allocation3 + $0x78] sm:$0xff]
      %v1080 = vld [vmem:[#allocation3 + $0x80] sm:$0xff]
      %v1081 = vld [vmem:[#allocation3 + $0x88] sm:$0xff]
      %v1082 = vld [vmem:[#allocation3 + $0x90] sm:$0xff]
      %v1083 = vld [vmem:[#allocation3 + $0x98] sm:$0xff]
      %v1084 = vld [vmem:[#allocation3 + $0xa0] sm:$0xff]
      %v1085 = vld [vmem:[#allocation3 + $0xa8] sm:$0xff]
      %v1086 = vld [vmem:[#allocation3 + $0xb0] sm:$0xff]
      %v1087 = vld [vmem:[#allocation3 + $0xb8] sm:$0xff]
      %v1088 = vld [vmem:[#allocation3 + $0xc0] sm:$0xff]
      %v1089 = vld [vmem:[#allocation3 + $0xc8] sm:$0xff]
      %v1090 = vld [vmem:[#allocation3 + $0xd0] sm:$0xff]
      %v1091 = vld [vmem:[#allocation3 + $0xd8] sm:$0xff]
      %v1092 = vld [vmem:[#allocation3 + $0xe0] sm:$0xff]
      %v1093 = vld [vmem:[#allocation3 + $0xe8] sm:$0xff]
      %v1094 = vld [vmem:[#allocation3 + $0xf0] sm:$0xff]
      %v1095 = vld [vmem:[#allocation3 + $0xf8] sm:$0xff]
      %v1096 = vld [vmem:[#allocation2] sm:$0xff]
      %v1097 = vld [vmem:[#allocation2 + $0x8] sm:$0xff]
      %v1098 = vld [vmem:[#allocation2 + $0x10] sm:$0xff]
      %v1099 = vld [vmem:[#allocation2 + $0x18] sm:$0xff]
      %v1100 = vld [vmem:[#allocation2 + $0x20] sm:$0xff]
      %v1101 = vld [vmem:[#allocation2 + $0x28] sm:$0xff]
      %v1102 = vld [vmem:[#allocation2 + $0x30] sm:$0xff]
      %v1103 = vld [vmem:[#allocation2 + $0x38] sm:$0xff]
      %v1104 = vld [vmem:[#allocation2 + $0x40] sm:$0xff]
      %v1105 = vld [vmem:[#allocation2 + $0x48] sm:$0xff]
      %v1106 = vld [vmem:[#allocation2 + $0x50] sm:$0xff]
      %v1107 = vld [vmem:[#allocation2 + $0x58] sm:$0xff]
      %v1108 = vld [vmem:[#allocation2 + $0x60] sm:$0xff]
      %v1109 = vld [vmem:[#allocation2 + $0x68] sm:$0xff]
      %v1110 = vld [vmem:[#allocation2 + $0x70] sm:$0xff]
      %v1111 = vld [vmem:[#allocation2 + $0x78] sm:$0xff]
      %v1112 = vld [vmem:[#allocation2 + $0x80] sm:$0xff]
      %v1113 = vld [vmem:[#allocation2 + $0x88] sm:$0xff]
      %v1114 = vld [vmem:[#allocation2 + $0x90] sm:$0xff]
      %v1115 = vld [vmem:[#allocation2 + $0x98] sm:$0xff]
      %v1116 = vld [vmem:[#allocation2 + $0xa0] sm:$0xff]
      %v1117 = vld [vmem:[#allocation2 + $0xa8] sm:$0xff]
      %v1118 = vld [vmem:[#allocation2 + $0xb0] sm:$0xff]
      %v1119 = vld [vmem:[#allocation2 + $0xb8] sm:$0xff]
      %v1120 = vld [vmem:[#allocation2 + $0xc0] sm:$0xff]
      %v1121 = vld [vmem:[#allocation2 + $0xc8] sm:$0xff]
      %v1122 = vld [vmem:[#allocation2 + $0xd0] sm:$0xff]
      %v1123 = vld [vmem:[#allocation2 + $0xd8] sm:$0xff]
      %v1124 = vld [vmem:[#allocation2 + $0xe0] sm:$0xff]
      %v1125 = vld [vmem:[#allocation2 + $0xe8] sm:$0xff]
      %v1126 = vld [vmem:[#allocation2 + $0xf0] sm:$0xff]
      %v1127 = vld [vmem:[#allocation2 + $0xf8] sm:$0xff]
      %v1128 = vadd.f32 %v1064, %v1096
      %v1129 = vadd.f32 %v1065, %v1097
      %v1130 = vadd.f32 %v1066, %v1098
      %v1131 = vadd.f32 %v1067, %v1099
      %v1132 = vadd.f32 %v1068, %v1100
      %v1133 = vadd.f32 %v1069, %v1101
      %v1134 = vadd.f32 %v1070, %v1102
      %v1135 = vadd.f32 %v1071, %v1103
      %v1136 = vadd.f32 %v1072, %v1104
      %v1137 = vadd.f32 %v1073, %v1105
      %v1138 = vadd.f32 %v1074, %v1106
      %v1139 = vadd.f32 %v1075, %v1107
      %v1140 = vadd.f32 %v1076, %v1108
      %v1141 = vadd.f32 %v1077, %v1109
      %v1142 = vadd.f32 %v1078, %v1110
      %v1143 = vadd.f32 %v1079, %v1111
      %v1144 = vadd.f32 %v1080, %v1112
      %v1145 = vadd.f32 %v1081, %v1113
      %v1146 = vadd.f32 %v1082, %v1114
      %v1147 = vadd.f32 %v1083, %v1115
      %v1148 = vadd.f32 %v1084, %v1116
      %v1149 = vadd.f32 %v1085, %v1117
      %v1150 = vadd.f32 %v1086, %v1118
      %v1151 = vadd.f32 %v1087, %v1119
      %v1152 = vadd.f32 %v1088, %v1120
      %v1153 = vadd.f32 %v1089, %v1121
      %v1154 = vadd.f32 %v1090, %v1122
      %v1155 = vadd.f32 %v1091, %v1123
      %v1156 = vadd.f32 %v1092, %v1124
      %v1157 = vadd.f32 %v1093, %v1125
      %v1158 = vadd.f32 %v1094, %v1126
      %v1159 = vadd.f32 %v1095, %v1127
      %v1160 = vpack.c.bf16 %v1129, %v1128
      %v1161 = vpack.c.bf16 %v1131, %v1130
      %v1162 = vpack.c.bf16 %v1133, %v1132
      %v1163 = vpack.c.bf16 %v1135, %v1134
      %v1164 = vpack.c.bf16 %v1137, %v1136
      %v1165 = vpack.c.bf16 %v1139, %v1138
      %v1166 = vpack.c.bf16 %v1141, %v1140
      %v1167 = vpack.c.bf16 %v1143, %v1142
      %v1168 = vpack.c.bf16 %v1145, %v1144
      %v1169 = vpack.c.bf16 %v1147, %v1146
      %v1170 = vpack.c.bf16 %v1149, %v1148
      %v1171 = vpack.c.bf16 %v1151, %v1150
      %v1172 = vpack.c.bf16 %v1153, %v1152
      %v1173 = vpack.c.bf16 %v1155, %v1154
      %v1174 = vpack.c.bf16 %v1157, %v1156
      %v1175 = vpack.c.bf16 %v1159, %v1158
      %v1176 = vmul.f32 %v1096, %v1064
      %v1177 = vmul.f32 %v1097, %v1065
      %v1178 = vmul.f32 %v1098, %v1066
      %v1179 = vmul.f32 %v1099, %v1067
      %v1180 = vmul.f32 %v1100, %v1068
      %v1181 = vmul.f32 %v1101, %v1069
      %v1182 = vmul.f32 %v1102, %v1070
      %v1183 = vmul.f32 %v1103, %v1071
      %v1184 = vmul.f32 %v1104, %v1072
      %v1185 = vmul.f32 %v1105, %v1073
      %v1186 = vmul.f32 %v1106, %v1074
      %v1187 = vmul.f32 %v1107, %v1075
      %v1188 = vmul.f32 %v1108, %v1076
      %v1189 = vmul.f32 %v1109, %v1077
      %v1190 = vmul.f32 %v1110, %v1078
      %v1191 = vmul.f32 %v1111, %v1079
      %v1192 = vmul.f32 %v1112, %v1080
      %v1193 = vmul.f32 %v1113, %v1081
      %v1194 = vmul.f32 %v1114, %v1082
      %v1195 = vmul.f32 %v1115, %v1083
      %v1196 = vmul.f32 %v1116, %v1084
      %v1197 = vmul.f32 %v1117, %v1085
      %v1198 = vmul.f32 %v1118, %v1086
      %v1199 = vmul.f32 %v1119, %v1087
      %v1200 = vmul.f32 %v1120, %v1088
      %v1201 = vmul.f32 %v1121, %v1089
      %v1202 = vmul.f32 %v1122, %v1090
      %v1203 = vmul.f32 %v1123, %v1091
      %v1204 = vmul.f32 %v1124, %v1092
      %v1205 = vmul.f32 %v1125, %v1093
      %v1206 = vmul.f32 %v1126, %v1094
      %v1207 = vmul.f32 %v1127, %v1095
      %v1208 = vpack.c.bf16 %v1177, %v1176
      %v1209 = vpack.c.bf16 %v1179, %v1178
      %v1210 = vpack.c.bf16 %v1181, %v1180
      %v1211 = vpack.c.bf16 %v1183, %v1182
      %v1212 = vpack.c.bf16 %v1185, %v1184
      %v1213 = vpack.c.bf16 %v1187, %v1186
      %v1214 = vpack.c.bf16 %v1189, %v1188
      %v1215 = vpack.c.bf16 %v1191, %v1190
      %v1216 = vpack.c.bf16 %v1193, %v1192
      %v1217 = vpack.c.bf16 %v1195, %v1194
      %v1218 = vpack.c.bf16 %v1197, %v1196
      %v1219 = vpack.c.bf16 %v1199, %v1198
      %v1220 = vpack.c.bf16 %v1201, %v1200
      %v1221 = vpack.c.bf16 %v1203, %v1202
      %v1222 = vpack.c.bf16 %v1205, %v1204
      %v1223 = vpack.c.bf16 %v1207, %v1206
      %v1224 = vld [vmem:[#allocation9] sm:$0xf]
      %v1225 = vld [vmem:[#allocation9 + $0x4] sm:$0xf]
      %v1226 = vld [vmem:[#allocation9 + $0x8] sm:$0xf]
      %v1227 = vld [vmem:[#allocation9 + $0xc] sm:$0xf]
      %v1228 = vld [vmem:[#allocation9 + $0x10] sm:$0xf]
      %v1229 = vld [vmem:[#allocation9 + $0x14] sm:$0xf]
      %v1230 = vld [vmem:[#allocation9 + $0x18] sm:$0xf]
      %v1231 = vld [vmem:[#allocation9 + $0x1c] sm:$0xf]
      %v1232 = vld [vmem:[#allocation9 + $0x20] sm:$0xf]
      %v1233 = vld [vmem:[#allocation9 + $0x24] sm:$0xf]
      %v1234 = vld [vmem:[#allocation9 + $0x28] sm:$0xf]
      %v1235 = vld [vmem:[#allocation9 + $0x2c] sm:$0xf]
      %v1236 = vld [vmem:[#allocation9 + $0x30] sm:$0xf]
      %v1237 = vld [vmem:[#allocation9 + $0x34] sm:$0xf]
      %v1238 = vld [vmem:[#allocation9 + $0x38] sm:$0xf]
      %v1239 = vld [vmem:[#allocation9 + $0x3c] sm:$0xf]
      %v1240 = vld [vmem:[#allocation11] sm:$0xf]
      %v1241 = vld [vmem:[#allocation11 + $0x4] sm:$0xf]
      %v1242 = vld [vmem:[#allocation11 + $0x8] sm:$0xf]
      %v1243 = vld [vmem:[#allocation11 + $0xc] sm:$0xf]
      %v1244 = vld [vmem:[#allocation11 + $0x10] sm:$0xf]
      %v1245 = vld [vmem:[#allocation11 + $0x14] sm:$0xf]
      %v1246 = vld [vmem:[#allocation11 + $0x18] sm:$0xf]
      %v1247 = vld [vmem:[#allocation11 + $0x1c] sm:$0xf]
      %v1248 = vld [vmem:[#allocation11 + $0x20] sm:$0xf]
      %v1249 = vld [vmem:[#allocation11 + $0x24] sm:$0xf]
      %v1250 = vld [vmem:[#allocation11 + $0x28] sm:$0xf]
      %v1251 = vld [vmem:[#allocation11 + $0x2c] sm:$0xf]
      %v1252 = vld [vmem:[#allocation11 + $0x30] sm:$0xf]
      %v1253 = vld [vmem:[#allocation11 + $0x34] sm:$0xf]
      %v1254 = vld [vmem:[#allocation11 + $0x38] sm:$0xf]
      %v1255 = vld [vmem:[#allocation11 + $0x3c] sm:$0xf]
      %v1272 = vunpack.c.l.b16 %v1240
      %v1273 = vunpack.c.l.b16 %v1241
      %v1274 = vunpack.c.l.b16 %v1242
      %v1275 = vunpack.c.l.b16 %v1243
      %v1276 = vunpack.c.l.b16 %v1244
      %v1277 = vunpack.c.l.b16 %v1245
      %v1278 = vunpack.c.l.b16 %v1246
      %v1279 = vunpack.c.l.b16 %v1247
      %v1280 = vunpack.c.l.b16 %v1248
      %v1281 = vunpack.c.l.b16 %v1249
      %v1282 = vunpack.c.l.b16 %v1250
      %v1283 = vunpack.c.l.b16 %v1251
      %v1284 = vunpack.c.l.b16 %v1252
      %v1285 = vunpack.c.l.b16 %v1253
      %v1286 = vunpack.c.l.b16 %v1254
      %v1287 = vunpack.c.l.b16 %v1255
      %v1288 = vpack.c.b16 %v1273, %v1272
      %v1289 = vpack.c.b16 %v1275, %v1274
      %v1290 = vpack.c.b16 %v1277, %v1276
      %v1291 = vpack.c.b16 %v1279, %v1278
      %v1292 = vpack.c.b16 %v1281, %v1280
      %v1293 = vpack.c.b16 %v1283, %v1282
      %v1294 = vpack.c.b16 %v1285, %v1284
      %v1295 = vpack.c.b16 %v1287, %v1286
      %1304 = vmatprep.subr.bf16.mxu0 0
      %1305 = vmatpush1.bf16.msra.mxu0 %v1288
      %1306 = vmatprep.subr.bf16.mxu0 0
      %1307 = vmatpush1.bf16.msra.mxu0 %v1289
      %1308 = vmatprep.subr.bf16.mxu0 0
      %1309 = vmatpush1.bf16.msra.mxu0 %v1290
      %1310 = vmatprep.subr.bf16.mxu0 0
      %1311 = vmatpush1.bf16.msra.mxu0 %v1291
      %1312 = vmatprep.subr.bf16.mxu0 0
      %1313 = vmatpush1.bf16.msra.mxu0 %v1292
      %1314 = vmatprep.subr.bf16.mxu0 0
      %1315 = vmatpush1.bf16.msra.mxu0 %v1293
      %1316 = vmatprep.subr.bf16.mxu0 0
      %1317 = vmatpush1.bf16.msra.mxu0 %v1294
      %1318 = vmatprep.subr.bf16.mxu0 0
      %1319 = vmatpush1.bf16.msra.mxu0 %v1295
      %1320 = vmatprep.subr.bf16.mxu0 0
      %1321 = vmatpush1.bf16.msra.mxu0 0
      %1322 = vmatprep.subr.bf16.mxu0 0
      %1323 = vmatpush1.bf16.msra.mxu0 0
      %1324 = vmatprep.subr.bf16.mxu0 0
      %1325 = vmatpush1.bf16.msra.mxu0 0
      %1326 = vmatprep.subr.bf16.mxu0 0
      %1327 = vmatpush1.bf16.msra.mxu0 0
      %1328 = vmatprep.subr.bf16.mxu0 0
      %1329 = vmatpush1.bf16.msra.mxu0 0
      %1330 = vmatprep.subr.bf16.mxu0 0
      %1331 = vmatpush1.bf16.msra.mxu0 0
      %1332 = vmatprep.subr.bf16.mxu0 0
      %1333 = vmatpush1.bf16.msra.mxu0 0
      %1334 = vmatprep.subr.bf16.mxu0 0
      %1335 = vmatpush1.bf16.msra.mxu0 0
      %1336 = vmatprep.mubr.bf16.mxu0 0
      %1337 = vmatmul.mubr.bf16.gmra.mrb[0].mxu0 %v1208
      %v1338 = vpop.f32.mrb[0].mxu0
      %v1339 = vadd.f32 0.0, %v1338
      %v1340 = vpop.f32.mrb[0].mxu0
      %v1341 = vpop.f32.mrb[0].mxu0
      %v1342 = vadd.f32 0.0, %v1341
      %v1343 = vpop.f32.mrb[0].mxu0
      %1344 = vmatprep.mubr.bf16.mxu0 0
      %1345 = vmatmul.mubr.bf16.gmra.mrb[0].mxu0 %v1209
      %v1346 = vpop.f32.mrb[0].mxu0
      %v1347 = vadd.f32 0.0, %v1346
      %v1348 = vpop.f32.mrb[0].mxu0
      %v1349 = vpop.f32.mrb[0].mxu0
      %v1350 = vadd.f32 0.0, %v1349
      %v1351 = vpop.f32.mrb[0].mxu0
      %1352 = vmatprep.mubr.bf16.mxu0 0
      %1353 = vmatmul.mubr.bf16.gmra.mrb[0].mxu0 %v1210
      %v1354 = vpop.f32.mrb[0].mxu0
      %v1355 = vadd.f32 0.0, %v1354
      %v1356 = vpop.f32.mrb[0].mxu0
      %v1357 = vpop.f32.mrb[0].mxu0
      %v1358 = vadd.f32 0.0, %v1357
      %v1359 = vpop.f32.mrb[0].mxu0
      %1360 = vmatprep.mubr.bf16.mxu0 0
      %1361 = vmatmul.mubr.bf16.gmra.mrb[0].mxu0 %v1211
      %v1362 = vpop.f32.mrb[0].mxu0
      %v1363 = vadd.f32 0.0, %v1362
      %v1364 = vpop.f32.mrb[0].mxu0
      %v1365 = vpop.f32.mrb[0].mxu0
      %v1366 = vadd.f32 0.0, %v1365
      %v1367 = vpop.f32.mrb[0].mxu0
      %1368 = vmatprep.mubr.bf16.mxu0 0
      %1369 = vmatmul.mubr.bf16.gmra.mrb[0].mxu0 %v1212
      %v1370 = vpop.f32.mrb[0].mxu0
      %v1371 = vadd.f32 0.0, %v1370
      %v1372 = vpop.f32.mrb[0].mxu0
      %v1373 = vpop.f32.mrb[0].mxu0
      %v1374 = vadd.f32 0.0, %v1373
      %v1375 = vpop.f32.mrb[0].mxu0
      %1376 = vmatprep.mubr.bf16.mxu0 0
      %1377 = vmatmul.mubr.bf16.gmra.mrb[0].mxu0 %v1213
      %v1378 = vpop.f32.mrb[0].mxu0
      %v1379 = vadd.f32 0.0, %v1378
      %v1380 = vpop.f32.mrb[0].mxu0
      %v1381 = vpop.f32.mrb[0].mxu0
      %v1382 = vadd.f32 0.0, %v1381
      %v1383 = vpop.f32.mrb[0].mxu0
      %1384 = vmatprep.mubr.bf16.mxu0 0
      %1385 = vmatmul.mubr.bf16.gmra.mrb[0].mxu0 %v1214
      %v1386 = vpop.f32.mrb[0].mxu0
      %v1387 = vadd.f32 0.0, %v1386
      %v1388 = vpop.f32.mrb[0].mxu0
      %v1389 = vpop.f32.mrb[0].mxu0
      %v1390 = vadd.f32 0.0, %v1389
      %v1391 = vpop.f32.mrb[0].mxu0
      %1392 = vmatprep.mubr.bf16.mxu0 0
      %1393 = vmatmul.mubr.bf16.gmra.mrb[0].mxu0 %v1215
      %v1394 = vpop.f32.mrb[0].mxu0
      %v1395 = vadd.f32 0.0, %v1394
      %v1396 = vpop.f32.mrb[0].mxu0
      %v1397 = vpop.f32.mrb[0].mxu0
      %v1398 = vadd.f32 0.0, %v1397
      %v1399 = vpop.f32.mrb[0].mxu0
      %1400 = vmatprep.mubr.bf16.mxu0 0
      %1401 = vmatmul.mubr.bf16.gmra.mrb[0].mxu0 %v1216
      %v1402 = vpop.f32.mrb[0].mxu0
      %v1403 = vadd.f32 0.0, %v1402
      %v1404 = vpop.f32.mrb[0].mxu0
      %v1405 = vpop.f32.mrb[0].mxu0
      %v1406 = vadd.f32 0.0, %v1405
      %v1407 = vpop.f32.mrb[0].mxu0
      %1408 = vmatprep.mubr.bf16.mxu0 0
      %1409 = vmatmul.mubr.bf16.gmra.mrb[0].mxu0 %v1217
      %v1410 = vpop.f32.mrb[0].mxu0
      %v1411 = vadd.f32 0.0, %v1410
      %v1412 = vpop.f32.mrb[0].mxu0
      %v1413 = vpop.f32.mrb[0].mxu0
      %v1414 = vadd.f32 0.0, %v1413
      %v1415 = vpop.f32.mrb[0].mxu0
      %1416 = vmatprep.mubr.bf16.mxu0 0
      %1417 = vmatmul.mubr.bf16.gmra.mrb[0].mxu0 %v1218
      %v1418 = vpop.f32.mrb[0].mxu0
      %v1419 = vadd.f32 0.0, %v1418
      %v1420 = vpop.f32.mrb[0].mxu0
      %v1421 = vpop.f32.mrb[0].mxu0
      %v1422 = vadd.f32 0.0, %v1421
      %v1423 = vpop.f32.mrb[0].mxu0
      %1424 = vmatprep.mubr.bf16.mxu0 0
      %1425 = vmatmul.mubr.bf16.gmra.mrb[0].mxu0 %v1219
      %v1426 = vpop.f32.mrb[0].mxu0
      %v1427 = vadd.f32 0.0, %v1426
      %v1428 = vpop.f32.mrb[0].mxu0
      %v1429 = vpop.f32.mrb[0].mxu0
      %v1430 = vadd.f32 0.0, %v1429
      %v1431 = vpop.f32.mrb[0].mxu0
      %1432 = vmatprep.mubr.bf16.mxu0 0
      %1433 = vmatmul.mubr.bf16.gmra.mrb[0].mxu0 %v1220
      %v1434 = vpop.f32.mrb[0].mxu0
      %v1435 = vadd.f32 0.0, %v1434
      %v1436 = vpop.f32.mrb[0].mxu0
      %v1437 = vpop.f32.mrb[0].mxu0
      %v1438 = vadd.f32 0.0, %v1437
      %v1439 = vpop.f32.mrb[0].mxu0
      %1440 = vmatprep.mubr.bf16.mxu0 0
      %1441 = vmatmul.mubr.bf16.gmra.mrb[0].mxu0 %v1221
      %v1442 = vpop.f32.mrb[0].mxu0
      %v1443 = vadd.f32 0.0, %v1442
      %v1444 = vpop.f32.mrb[0].mxu0
      %v1445 = vpop.f32.mrb[0].mxu0
      %v1446 = vadd.f32 0.0, %v1445
      %v1447 = vpop.f32.mrb[0].mxu0
      %1448 = vmatprep.mubr.bf16.mxu0 0
      %1449 = vmatmul.mubr.bf16.gmra.mrb[0].mxu0 %v1222
      %v1450 = vpop.f32.mrb[0].mxu0
      %v1451 = vadd.f32 0.0, %v1450
      %v1452 = vpop.f32.mrb[0].mxu0
      %v1453 = vpop.f32.mrb[0].mxu0
      %v1454 = vadd.f32 0.0, %v1453
      %v1455 = vpop.f32.mrb[0].mxu0
      %1456 = vmatprep.mubr.bf16.mxu0 0
      %1457 = vmatmul.mubr.bf16.gmra.mrb[0].mxu0 %v1223
      %v1458 = vpop.f32.mrb[0].mxu0
      %v1459 = vadd.f32 0.0, %v1458
      %v1460 = vpop.f32.mrb[0].mxu0
      %v1461 = vpop.f32.mrb[0].mxu0
      %v1462 = vadd.f32 0.0, %v1461
      %v1463 = vpop.f32.mrb[0].mxu0
      %1464 = vdwg.mxu0
      %v1481 = vunpack.c.l.b16 %v1224
      %v1482 = vunpack.c.l.b16 %v1225
      %v1483 = vunpack.c.l.b16 %v1226
      %v1484 = vunpack.c.l.b16 %v1227
      %v1485 = vunpack.c.l.b16 %v1228
      %v1486 = vunpack.c.l.b16 %v1229
      %v1487 = vunpack.c.l.b16 %v1230
      %v1488 = vunpack.c.l.b16 %v1231
      %v1489 = vunpack.c.l.b16 %v1232
      %v1490 = vunpack.c.l.b16 %v1233
      %v1491 = vunpack.c.l.b16 %v1234
      %v1492 = vunpack.c.l.b16 %v1235
      %v1493 = vunpack.c.l.b16 %v1236
      %v1494 = vunpack.c.l.b16 %v1237
      %v1495 = vunpack.c.l.b16 %v1238
      %v1496 = vunpack.c.l.b16 %v1239
      %v1497 = vpack.c.b16 %v1482, %v1481
      %v1498 = vpack.c.b16 %v1484, %v1483
      %v1499 = vpack.c.b16 %v1486, %v1485
      %v1500 = vpack.c.b16 %v1488, %v1487
      %v1501 = vpack.c.b16 %v1490, %v1489
      %v1502 = vpack.c.b16 %v1492, %v1491
      %v1503 = vpack.c.b16 %v1494, %v1493
      %v1504 = vpack.c.b16 %v1496, %v1495
      %1513 = vmatprep.subr.bf16.mxu0 0
      %1514 = vmatpush1.bf16.msra.mxu0 %v1497
      %1515 = vmatprep.subr.bf16.mxu0 0
      %1516 = vmatpush1.bf16.msra.mxu0 %v1498
      %1517 = vmatprep.subr.bf16.mxu0 0
      %1518 = vmatpush1.bf16.msra.mxu0 %v1499
      %1519 = vmatprep.subr.bf16.mxu0 0
      %1520 = vmatpush1.bf16.msra.mxu0 %v1500
      %1521 = vmatprep.subr.bf16.mxu0 0
      %1522 = vmatpush1.bf16.msra.mxu0 %v1501
      %1523 = vmatprep.subr.bf16.mxu0 0
      %1524 = vmatpush1.bf16.msra.mxu0 %v1502
      %1525 = vmatprep.subr.bf16.mxu0 0
      %1526 = vmatpush1.bf16.msra.mxu0 %v1503
      %1527 = vmatprep.subr.bf16.mxu0 0
      %1528 = vmatpush1.bf16.msra.mxu0 %v1504
      %1529 = vmatprep.subr.bf16.mxu0 0
      %1530 = vmatpush1.bf16.msra.mxu0 0
      %1531 = vmatprep.subr.bf16.mxu0 0
      %1532 = vmatpush1.bf16.msra.mxu0 0
      %1533 = vmatprep.subr.bf16.mxu0 0
      %1534 = vmatpush1.bf16.msra.mxu0 0
      %1535 = vmatprep.subr.bf16.mxu0 0
      %1536 = vmatpush1.bf16.msra.mxu0 0
      %1537 = vmatprep.subr.bf16.mxu0 0
      %1538 = vmatpush1.bf16.msra.mxu0 0
      %1539 = vmatprep.subr.bf16.mxu0 0
      %1540 = vmatpush1.bf16.msra.mxu0 0
      %1541 = vmatprep.subr.bf16.mxu0 0
      %1542 = vmatpush1.bf16.msra.mxu0 0
      %1543 = vmatprep.subr.bf16.mxu0 0
      %1544 = vmatpush1.bf16.msra.mxu0 0
      %1545 = vmatprep.mubr.bf16.mxu0 0
      %1546 = vmatmul.mubr.bf16.gmra.mrb[0].mxu0 %v1160
      %v1547 = vpop.f32.mrb[0].mxu0
      %v1548 = vadd.f32 %v1339, %v1547
      %v1549 = vpop.f32.mrb[0].mxu0
      %v1550 = vpop.f32.mrb[0].mxu0
      %v1551 = vadd.f32 %v1342, %v1550
      %v1552 = vpop.f32.mrb[0].mxu0
      %1553 = vmatprep.mubr.bf16.mxu0 0
      %1554 = vmatmul.mubr.bf16.gmra.mrb[0].mxu0 %v1161
      %v1555 = vpop.f32.mrb[0].mxu0
      %v1556 = vadd.f32 %v1347, %v1555
      %v1557 = vpop.f32.mrb[0].mxu0
      %v1558 = vpop.f32.mrb[0].mxu0
      %v1559 = vadd.f32 %v1350, %v1558
      %v1560 = vpop.f32.mrb[0].mxu0
      %1561 = vmatprep.mubr.bf16.mxu0 0
      %1562 = vmatmul.mubr.bf16.gmra.mrb[0].mxu0 %v1162
      %v1563 = vpop.f32.mrb[0].mxu0
      %v1564 = vadd.f32 %v1355, %v1563
      %v1565 = vpop.f32.mrb[0].mxu0
      %v1566 = vpop.f32.mrb[0].mxu0
      %v1567 = vadd.f32 %v1358, %v1566
      %v1568 = vpop.f32.mrb[0].mxu0
      %1569 = vmatprep.mubr.bf16.mxu0 0
      %1570 = vmatmul.mubr.bf16.gmra.mrb[0].mxu0 %v1163
      %v1571 = vpop.f32.mrb[0].mxu0
      %v1572 = vadd.f32 %v1363, %v1571
      %v1573 = vpop.f32.mrb[0].mxu0
      %v1574 = vpop.f32.mrb[0].mxu0
      %v1575 = vadd.f32 %v1366, %v1574
      %v1576 = vpop.f32.mrb[0].mxu0
      %1577 = vmatprep.mubr.bf16.mxu0 0
      %1578 = vmatmul.mubr.bf16.gmra.mrb[0].mxu0 %v1164
      %v1579 = vpop.f32.mrb[0].mxu0
      %v1580 = vadd.f32 %v1371, %v1579
      %v1581 = vpop.f32.mrb[0].mxu0
      %v1582 = vpop.f32.mrb[0].mxu0
      %v1583 = vadd.f32 %v1374, %v1582
      %v1584 = vpop.f32.mrb[0].mxu0
      %1585 = vmatprep.mubr.bf16.mxu0 0
      %1586 = vmatmul.mubr.bf16.gmra.mrb[0].mxu0 %v1165
      %v1587 = vpop.f32.mrb[0].mxu0
      %v1588 = vadd.f32 %v1379, %v1587
      %v1589 = vpop.f32.mrb[0].mxu0
      %v1590 = vpop.f32.mrb[0].mxu0
      %v1591 = vadd.f32 %v1382, %v1590
      %v1592 = vpop.f32.mrb[0].mxu0
      %1593 = vmatprep.mubr.bf16.mxu0 0
      %1594 = vmatmul.mubr.bf16.gmra.mrb[0].mxu0 %v1166
      %v1595 = vpop.f32.mrb[0].mxu0
      %v1596 = vadd.f32 %v1387, %v1595
      %v1597 = vpop.f32.mrb[0].mxu0
      %v1598 = vpop.f32.mrb[0].mxu0
      %v1599 = vadd.f32 %v1390, %v1598
      %v1600 = vpop.f32.mrb[0].mxu0
      %1601 = vmatprep.mubr.bf16.mxu0 0
      %1602 = vmatmul.mubr.bf16.gmra.mrb[0].mxu0 %v1167
      %v1603 = vpop.f32.mrb[0].mxu0
      %v1604 = vadd.f32 %v1395, %v1603
      %v1605 = vpop.f32.mrb[0].mxu0
      %v1606 = vpop.f32.mrb[0].mxu0
      %v1607 = vadd.f32 %v1398, %v1606
      %v1608 = vpop.f32.mrb[0].mxu0
      %1609 = vmatprep.mubr.bf16.mxu0 0
      %1610 = vmatmul.mubr.bf16.gmra.mrb[0].mxu0 %v1168
      %v1611 = vpop.f32.mrb[0].mxu0
      %v1612 = vadd.f32 %v1403, %v1611
      %v1613 = vpop.f32.mrb[0].mxu0
      %v1614 = vpop.f32.mrb[0].mxu0
      %v1615 = vadd.f32 %v1406, %v1614
      %v1616 = vpop.f32.mrb[0].mxu0
      %1617 = vmatprep.mubr.bf16.mxu0 0
      %1618 = vmatmul.mubr.bf16.gmra.mrb[0].mxu0 %v1169
      %v1619 = vpop.f32.mrb[0].mxu0
      %v1620 = vadd.f32 %v1411, %v1619
      %v1621 = vpop.f32.mrb[0].mxu0
      %v1622 = vpop.f32.mrb[0].mxu0
      %v1623 = vadd.f32 %v1414, %v1622
      %v1624 = vpop.f32.mrb[0].mxu0
      %1625 = vmatprep.mubr.bf16.mxu0 0
      %1626 = vmatmul.mubr.bf16.gmra.mrb[0].mxu0 %v1170
      %v1627 = vpop.f32.mrb[0].mxu0
      %v1628 = vadd.f32 %v1419, %v1627
      %v1629 = vpop.f32.mrb[0].mxu0
      %v1630 = vpop.f32.mrb[0].mxu0
      %v1631 = vadd.f32 %v1422, %v1630
      %v1632 = vpop.f32.mrb[0].mxu0
      %1633 = vmatprep.mubr.bf16.mxu0 0
      %1634 = vmatmul.mubr.bf16.gmra.mrb[0].mxu0 %v1171
      %v1635 = vpop.f32.mrb[0].mxu0
      %v1636 = vadd.f32 %v1427, %v1635
      %v1637 = vpop.f32.mrb[0].mxu0
      %v1638 = vpop.f32.mrb[0].mxu0
      %v1639 = vadd.f32 %v1430, %v1638
      %v1640 = vpop.f32.mrb[0].mxu0
      %1641 = vmatprep.mubr.bf16.mxu0 0
      %1642 = vmatmul.mubr.bf16.gmra.mrb[0].mxu0 %v1172
      %v1643 = vpop.f32.mrb[0].mxu0
      %v1644 = vadd.f32 %v1435, %v1643
      %v1645 = vpop.f32.mrb[0].mxu0
      %v1646 = vpop.f32.mrb[0].mxu0
      %v1647 = vadd.f32 %v1438, %v1646
      %v1648 = vpop.f32.mrb[0].mxu0
      %1649 = vmatprep.mubr.bf16.mxu0 0
      %1650 = vmatmul.mubr.bf16.gmra.mrb[0].mxu0 %v1173
      %v1651 = vpop.f32.mrb[0].mxu0
      %v1652 = vadd.f32 %v1443, %v1651
      %v1653 = vpop.f32.mrb[0].mxu0
      %v1654 = vpop.f32.mrb[0].mxu0
      %v1655 = vadd.f32 %v1446, %v1654
      %v1656 = vpop.f32.mrb[0].mxu0
      %1657 = vmatprep.mubr.bf16.mxu0 0
      %1658 = vmatmul.mubr.bf16.gmra.mrb[0].mxu0 %v1174
      %v1659 = vpop.f32.mrb[0].mxu0
      %v1660 = vadd.f32 %v1451, %v1659
      %v1661 = vpop.f32.mrb[0].mxu0
      %v1662 = vpop.f32.mrb[0].mxu0
      %v1663 = vadd.f32 %v1454, %v1662
      %v1664 = vpop.f32.mrb[0].mxu0
      %1665 = vmatprep.mubr.bf16.mxu0 0
      %1666 = vmatmul.mubr.bf16.gmra.mrb[0].mxu0 %v1175
      %v1667 = vpop.f32.mrb[0].mxu0
      %v1668 = vadd.f32 %v1459, %v1667
      %v1669 = vpop.f32.mrb[0].mxu0
      %v1670 = vpop.f32.mrb[0].mxu0
      %v1671 = vadd.f32 %v1462, %v1670
      %v1672 = vpop.f32.mrb[0].mxu0
      %1673 = vdwg.mxu0
      %vm1674 = vcmp.gt.f32.partialorder %v1548, 0.0
      %vm1675 = vcmp.gt.f32.partialorder %v1551, 0.0
      %vm1676 = vcmp.gt.f32.partialorder %v1556, 0.0
      %vm1677 = vcmp.gt.f32.partialorder %v1559, 0.0
      %vm1678 = vcmp.gt.f32.partialorder %v1564, 0.0
      %vm1679 = vcmp.gt.f32.partialorder %v1567, 0.0
      %vm1680 = vcmp.gt.f32.partialorder %v1572, 0.0
      %vm1681 = vcmp.gt.f32.partialorder %v1575, 0.0
      %vm1682 = vcmp.gt.f32.partialorder %v1580, 0.0
      %vm1683 = vcmp.gt.f32.partialorder %v1583, 0.0
      %vm1684 = vcmp.gt.f32.partialorder %v1588, 0.0
      %vm1685 = vcmp.gt.f32.partialorder %v1591, 0.0
      %vm1686 = vcmp.gt.f32.partialorder %v1596, 0.0
      %vm1687 = vcmp.gt.f32.partialorder %v1599, 0.0
      %vm1688 = vcmp.gt.f32.partialorder %v1604, 0.0
      %vm1689 = vcmp.gt.f32.partialorder %v1607, 0.0
      %vm1690 = vcmp.gt.f32.partialorder %v1612, 0.0
      %vm1691 = vcmp.gt.f32.partialorder %v1615, 0.0
      %vm1692 = vcmp.gt.f32.partialorder %v1620, 0.0
      %vm1693 = vcmp.gt.f32.partialorder %v1623, 0.0
      %vm1694 = vcmp.gt.f32.partialorder %v1628, 0.0
      %vm1695 = vcmp.gt.f32.partialorder %v1631, 0.0
      %vm1696 = vcmp.gt.f32.partialorder %v1636, 0.0
      %vm1697 = vcmp.gt.f32.partialorder %v1639, 0.0
      %vm1698 = vcmp.gt.f32.partialorder %v1644, 0.0
      %vm1699 = vcmp.gt.f32.partialorder %v1647, 0.0
      %vm1700 = vcmp.gt.f32.partialorder %v1652, 0.0
      %vm1701 = vcmp.gt.f32.partialorder %v1655, 0.0
      %vm1702 = vcmp.gt.f32.partialorder %v1660, 0.0
      %vm1703 = vcmp.gt.f32.partialorder %v1663, 0.0
      %vm1704 = vcmp.gt.f32.partialorder %v1668, 0.0
      %vm1705 = vcmp.gt.f32.partialorder %v1671, 0.0
      %v1706 = vmul.f32 %v1548, 0.2
      %v1707 = vmul.f32 %v1551, 0.2
      %v1708 = vmul.f32 %v1556, 0.2
      %v1709 = vmul.f32 %v1559, 0.2
      %v1710 = vmul.f32 %v1564, 0.2
      %v1711 = vmul.f32 %v1567, 0.2
      %v1712 = vmul.f32 %v1572, 0.2
      %v1713 = vmul.f32 %v1575, 0.2
      %v1714 = vmul.f32 %v1580, 0.2
      %v1715 = vmul.f32 %v1583, 0.2
      %v1716 = vmul.f32 %v1588, 0.2
      %v1717 = vmul.f32 %v1591, 0.2
      %v1718 = vmul.f32 %v1596, 0.2
      %v1719 = vmul.f32 %v1599, 0.2
      %v1720 = vmul.f32 %v1604, 0.2
      %v1721 = vmul.f32 %v1607, 0.2
      %v1722 = vmul.f32 %v1612, 0.2
      %v1723 = vmul.f32 %v1615, 0.2
      %v1724 = vmul.f32 %v1620, 0.2
      %v1725 = vmul.f32 %v1623, 0.2
      %v1726 = vmul.f32 %v1628, 0.2
      %v1727 = vmul.f32 %v1631, 0.2
      %v1728 = vmul.f32 %v1636, 0.2
      %v1729 = vmul.f32 %v1639, 0.2
      %v1730 = vmul.f32 %v1644, 0.2
      %v1731 = vmul.f32 %v1647, 0.2
      %v1732 = vmul.f32 %v1652, 0.2
      %v1733 = vmul.f32 %v1655, 0.2
      %v1734 = vmul.f32 %v1660, 0.2
      %v1735 = vmul.f32 %v1663, 0.2
      %v1736 = vmul.f32 %v1668, 0.2
      %v1737 = vmul.f32 %v1671, 0.2
      %v1738 = vsel %vm1674, %v1548, %v1706
      %v1739 = vsel %vm1675, %v1551, %v1707
      %v1740 = vsel %vm1676, %v1556, %v1708
      %v1741 = vsel %vm1677, %v1559, %v1709
      %v1742 = vsel %vm1678, %v1564, %v1710
      %v1743 = vsel %vm1679, %v1567, %v1711
      %v1744 = vsel %vm1680, %v1572, %v1712
      %v1745 = vsel %vm1681, %v1575, %v1713
      %v1746 = vsel %vm1682, %v1580, %v1714
      %v1747 = vsel %vm1683, %v1583, %v1715
      %v1748 = vsel %vm1684, %v1588, %v1716
      %v1749 = vsel %vm1685, %v1591, %v1717
      %v1750 = vsel %vm1686, %v1596, %v1718
      %v1751 = vsel %vm1687, %v1599, %v1719
      %v1752 = vsel %vm1688, %v1604, %v1720
      %v1753 = vsel %vm1689, %v1607, %v1721
      %v1754 = vsel %vm1690, %v1612, %v1722
      %v1755 = vsel %vm1691, %v1615, %v1723
      %v1756 = vsel %vm1692, %v1620, %v1724
      %v1757 = vsel %vm1693, %v1623, %v1725
      %v1758 = vsel %vm1694, %v1628, %v1726
      %v1759 = vsel %vm1695, %v1631, %v1727
      %v1760 = vsel %vm1696, %v1636, %v1728
      %v1761 = vsel %vm1697, %v1639, %v1729
      %v1762 = vsel %vm1698, %v1644, %v1730
      %v1763 = vsel %vm1699, %v1647, %v1731
      %v1764 = vsel %vm1700, %v1652, %v1732
      %v1765 = vsel %vm1701, %v1655, %v1733
      %v1766 = vsel %vm1702, %v1660, %v1734
      %v1767 = vsel %vm1703, %v1663, %v1735
      %v1768 = vsel %vm1704, %v1668, %v1736
      %v1769 = vsel %vm1705, %v1671, %v1737
      %v1770 = vmul.f32 %v1738, %v1738
      %v1771 = vmul.f32 %v1739, %v1739
      %v1772 = vmul.f32 %v1740, %v1740
      %v1773 = vmul.f32 %v1741, %v1741
      %v1774 = vmul.f32 %v1742, %v1742
      %v1775 = vmul.f32 %v1743, %v1743
      %v1776 = vmul.f32 %v1744, %v1744
      %v1777 = vmul.f32 %v1745, %v1745
      %v1778 = vmul.f32 %v1746, %v1746
      %v1779 = vmul.f32 %v1747, %v1747
      %v1780 = vmul.f32 %v1748, %v1748
      %v1781 = vmul.f32 %v1749, %v1749
      %v1782 = vmul.f32 %v1750, %v1750
      %v1783 = vmul.f32 %v1751, %v1751
      %v1784 = vmul.f32 %v1752, %v1752
      %v1785 = vmul.f32 %v1753, %v1753
      %v1786 = vmul.f32 %v1754, %v1754
      %v1787 = vmul.f32 %v1755, %v1755
      %v1788 = vmul.f32 %v1756, %v1756
      %v1789 = vmul.f32 %v1757, %v1757
      %v1790 = vmul.f32 %v1758, %v1758
      %v1791 = vmul.f32 %v1759, %v1759
      %v1792 = vmul.f32 %v1760, %v1760
      %v1793 = vmul.f32 %v1761, %v1761
      %v1794 = vmul.f32 %v1762, %v1762
      %v1795 = vmul.f32 %v1763, %v1763
      %v1796 = vmul.f32 %v1764, %v1764
      %v1797 = vmul.f32 %v1765, %v1765
      %v1798 = vmul.f32 %v1766, %v1766
      %v1799 = vmul.f32 %v1767, %v1767
      %v1800 = vmul.f32 %v1768, %v1768
      %v1801 = vmul.f32 %v1769, %v1769
      %1802 = vadd.xlane.f32.xlu0 %v1770
      %v1803 = vpop.xlane.xlu0 %1802
      %1804 = vadd.xlane.f32.xlu0 %v1771
      %v1805 = vpop.xlane.xlu0 %1804
      %1806 = vadd.xlane.f32.xlu0 %v1772
      %v1807 = vpop.xlane.xlu0 %1806
      %1808 = vadd.xlane.f32.xlu0 %v1773
      %v1809 = vpop.xlane.xlu0 %1808
      %1810 = vadd.xlane.f32.xlu0 %v1774
      %v1811 = vpop.xlane.xlu0 %1810
      %1812 = vadd.xlane.f32.xlu0 %v1775
      %v1813 = vpop.xlane.xlu0 %1812
      %1814 = vadd.xlane.f32.xlu0 %v1776
      %v1815 = vpop.xlane.xlu0 %1814
      %1816 = vadd.xlane.f32.xlu0 %v1777
      %v1817 = vpop.xlane.xlu0 %1816
      %1818 = vadd.xlane.f32.xlu0 %v1778
      %v1819 = vpop.xlane.xlu0 %1818
      %1820 = vadd.xlane.f32.xlu0 %v1779
      %v1821 = vpop.xlane.xlu0 %1820
      %1822 = vadd.xlane.f32.xlu0 %v1780
      %v1823 = vpop.xlane.xlu0 %1822
      %1824 = vadd.xlane.f32.xlu0 %v1781
      %v1825 = vpop.xlane.xlu0 %1824
      %1826 = vadd.xlane.f32.xlu0 %v1782
      %v1827 = vpop.xlane.xlu0 %1826
      %1828 = vadd.xlane.f32.xlu0 %v1783
      %v1829 = vpop.xlane.xlu0 %1828
      %1830 = vadd.xlane.f32.xlu0 %v1784
      %v1831 = vpop.xlane.xlu0 %1830
      %1832 = vadd.xlane.f32.xlu0 %v1785
      %v1833 = vpop.xlane.xlu0 %1832
      %1834 = vadd.xlane.f32.xlu0 %v1786
      %v1835 = vpop.xlane.xlu0 %1834
      %1836 = vadd.xlane.f32.xlu0 %v1787
      %v1837 = vpop.xlane.xlu0 %1836
      %1838 = vadd.xlane.f32.xlu0 %v1788
      %v1839 = vpop.xlane.xlu0 %1838
      %1840 = vadd.xlane.f32.xlu0 %v1789
      %v1841 = vpop.xlane.xlu0 %1840
      %1842 = vadd.xlane.f32.xlu0 %v1790
      %v1843 = vpop.xlane.xlu0 %1842
      %1844 = vadd.xlane.f32.xlu0 %v1791
      %v1845 = vpop.xlane.xlu0 %1844
      %1846 = vadd.xlane.f32.xlu0 %v1792
      %v1847 = vpop.xlane.xlu0 %1846
      %1848 = vadd.xlane.f32.xlu0 %v1793
      %v1849 = vpop.xlane.xlu0 %1848
      %1850 = vadd.xlane.f32.xlu0 %v1794
      %v1851 = vpop.xlane.xlu0 %1850
      %1852 = vadd.xlane.f32.xlu0 %v1795
      %v1853 = vpop.xlane.xlu0 %1852
      %1854 = vadd.xlane.f32.xlu0 %v1796
      %v1855 = vpop.xlane.xlu0 %1854
      %1856 = vadd.xlane.f32.xlu0 %v1797
      %v1857 = vpop.xlane.xlu0 %1856
      %1858 = vadd.xlane.f32.xlu0 %v1798
      %v1859 = vpop.xlane.xlu0 %1858
      %1860 = vadd.xlane.f32.xlu0 %v1799
      %v1861 = vpop.xlane.xlu0 %1860
      %1862 = vadd.xlane.f32.xlu0 %v1800
      %v1863 = vpop.xlane.xlu0 %1862
      %1864 = vadd.xlane.f32.xlu0 %v1801
      %v1865 = vpop.xlane.xlu0 %1864
      %v1866 = vmax.f32 %v1803, 1e-24
      %v1867 = vmax.f32 %v1805, 1e-24
      %v1868 = vmax.f32 %v1807, 1e-24
      %v1869 = vmax.f32 %v1809, 1e-24
      %v1870 = vmax.f32 %v1811, 1e-24
      %v1871 = vmax.f32 %v1813, 1e-24
      %v1872 = vmax.f32 %v1815, 1e-24
      %v1873 = vmax.f32 %v1817, 1e-24
      %v1874 = vmax.f32 %v1819, 1e-24
      %v1875 = vmax.f32 %v1821, 1e-24
      %v1876 = vmax.f32 %v1823, 1e-24
      %v1877 = vmax.f32 %v1825, 1e-24
      %v1878 = vmax.f32 %v1827, 1e-24
      %v1879 = vmax.f32 %v1829, 1e-24
      %v1880 = vmax.f32 %v1831, 1e-24
      %v1881 = vmax.f32 %v1833, 1e-24
      %v1882 = vmax.f32 %v1835, 1e-24
      %v1883 = vmax.f32 %v1837, 1e-24
      %v1884 = vmax.f32 %v1839, 1e-24
      %v1885 = vmax.f32 %v1841, 1e-24
      %v1886 = vmax.f32 %v1843, 1e-24
      %v1887 = vmax.f32 %v1845, 1e-24
      %v1888 = vmax.f32 %v1847, 1e-24
      %v1889 = vmax.f32 %v1849, 1e-24
      %v1890 = vmax.f32 %v1851, 1e-24
      %v1891 = vmax.f32 %v1853, 1e-24
      %v1892 = vmax.f32 %v1855, 1e-24
      %v1893 = vmax.f32 %v1857, 1e-24
      %v1894 = vmax.f32 %v1859, 1e-24
      %v1895 = vmax.f32 %v1861, 1e-24
      %v1896 = vmax.f32 %v1863, 1e-24
      %v1897 = vmax.f32 %v1865, 1e-24
      %v1898 = vrsqrt.pop %v1866
      %v1899 = vrsqrt.pop %v1867
      %v1900 = vrsqrt.pop %v1868
      %v1901 = vrsqrt.pop %v1869
      %v1902 = vrsqrt.pop %v1870
      %v1903 = vrsqrt.pop %v1871
      %v1904 = vrsqrt.pop %v1872
      %v1905 = vrsqrt.pop %v1873
      %v1906 = vrsqrt.pop %v1874
      %v1907 = vrsqrt.pop %v1875
      %v1908 = vrsqrt.pop %v1876
      %v1909 = vrsqrt.pop %v1877
      %v1910 = vrsqrt.pop %v1878
      %v1911 = vrsqrt.pop %v1879
      %v1912 = vrsqrt.pop %v1880
      %v1913 = vrsqrt.pop %v1881
      %v1914 = vrsqrt.pop %v1882
      %v1915 = vrsqrt.pop %v1883
      %v1916 = vrsqrt.pop %v1884
      %v1917 = vrsqrt.pop %v1885
      %v1918 = vrsqrt.pop %v1886
      %v1919 = vrsqrt.pop %v1887
      %v1920 = vrsqrt.pop %v1888
      %v1921 = vrsqrt.pop %v1889
      %v1922 = vrsqrt.pop %v1890
      %v1923 = vrsqrt.pop %v1891
      %v1924 = vrsqrt.pop %v1892
      %v1925 = vrsqrt.pop %v1893
      %v1926 = vrsqrt.pop %v1894
      %v1927 = vrsqrt.pop %v1895
      %v1928 = vrsqrt.pop %v1896
      %v1929 = vrsqrt.pop %v1897
      %v1930 = vmul.f32 %v1738, %v1898
      %v1931 = vmul.f32 %v1739, %v1899
      %v1932 = vmul.f32 %v1740, %v1900
      %v1933 = vmul.f32 %v1741, %v1901
      %v1934 = vmul.f32 %v1742, %v1902
      %v1935 = vmul.f32 %v1743, %v1903
      %v1936 = vmul.f32 %v1744, %v1904
      %v1937 = vmul.f32 %v1745, %v1905
      %v1938 = vmul.f32 %v1746, %v1906
      %v1939 = vmul.f32 %v1747, %v1907
      %v1940 = vmul.f32 %v1748, %v1908
      %v1941 = vmul.f32 %v1749, %v1909
      %v1942 = vmul.f32 %v1750, %v1910
      %v1943 = vmul.f32 %v1751, %v1911
      %v1944 = vmul.f32 %v1752, %v1912
      %v1945 = vmul.f32 %v1753, %v1913
      %v1946 = vmul.f32 %v1754, %v1914
      %v1947 = vmul.f32 %v1755, %v1915
      %v1948 = vmul.f32 %v1756, %v1916
      %v1949 = vmul.f32 %v1757, %v1917
      %v1950 = vmul.f32 %v1758, %v1918
      %v1951 = vmul.f32 %v1759, %v1919
      %v1952 = vmul.f32 %v1760, %v1920
      %v1953 = vmul.f32 %v1761, %v1921
      %v1954 = vmul.f32 %v1762, %v1922
      %v1955 = vmul.f32 %v1763, %v1923
      %v1956 = vmul.f32 %v1764, %v1924
      %v1957 = vmul.f32 %v1765, %v1925
      %v1958 = vmul.f32 %v1766, %v1926
      %v1959 = vmul.f32 %v1767, %v1927
      %v1960 = vmul.f32 %v1768, %v1928
      %v1961 = vmul.f32 %v1769, %v1929
      %1962 = vst [vmem:[#allocation12] sm:$0xff] %v1930
      %1963 = vst [vmem:[#allocation12 + $0x8] sm:$0xff] %v1931
      %1964 = vst [vmem:[#allocation12 + $0x10] sm:$0xff] %v1932
      %1965 = vst [vmem:[#allocation12 + $0x18] sm:$0xff] %v1933
      %1966 = vst [vmem:[#allocation12 + $0x20] sm:$0xff] %v1934
      %1967 = vst [vmem:[#allocation12 + $0x28] sm:$0xff] %v1935
      %1968 = vst [vmem:[#allocation12 + $0x30] sm:$0xff] %v1936
      %1969 = vst [vmem:[#allocation12 + $0x38] sm:$0xff] %v1937
      %1970 = vst [vmem:[#allocation12 + $0x40] sm:$0xff] %v1938
      %1971 = vst [vmem:[#allocation12 + $0x48] sm:$0xff] %v1939
      %1972 = vst [vmem:[#allocation12 + $0x50] sm:$0xff] %v1940
      %1973 = vst [vmem:[#allocation12 + $0x58] sm:$0xff] %v1941
      %1974 = vst [vmem:[#allocation12 + $0x60] sm:$0xff] %v1942
      %1975 = vst [vmem:[#allocation12 + $0x68] sm:$0xff] %v1943
      %1976 = vst [vmem:[#allocation12 + $0x70] sm:$0xff] %v1944
      %1977 = vst [vmem:[#allocation12 + $0x78] sm:$0xff] %v1945
      %1978 = vst [vmem:[#allocation12 + $0x80] sm:$0xff] %v1946
      %1979 = vst [vmem:[#allocation12 + $0x88] sm:$0xff] %v1947
      %1980 = vst [vmem:[#allocation12 + $0x90] sm:$0xff] %v1948
      %1981 = vst [vmem:[#allocation12 + $0x98] sm:$0xff] %v1949
      %1982 = vst [vmem:[#allocation12 + $0xa0] sm:$0xff] %v1950
      %1983 = vst [vmem:[#allocation12 + $0xa8] sm:$0xff] %v1951
      %1984 = vst [vmem:[#allocation12 + $0xb0] sm:$0xff] %v1952
      %1985 = vst [vmem:[#allocation12 + $0xb8] sm:$0xff] %v1953
      %1986 = vst [vmem:[#allocation12 + $0xc0] sm:$0xff] %v1954
      %1987 = vst [vmem:[#allocation12 + $0xc8] sm:$0xff] %v1955
      %1988 = vst [vmem:[#allocation12 + $0xd0] sm:$0xff] %v1956
      %1989 = vst [vmem:[#allocation12 + $0xd8] sm:$0xff] %v1957
      %1990 = vst [vmem:[#allocation12 + $0xe0] sm:$0xff] %v1958
      %1991 = vst [vmem:[#allocation12 + $0xe8] sm:$0xff] %v1959
      %1992 = vst [vmem:[#allocation12 + $0xf0] sm:$0xff] %v1960
      %1993 = vst [vmem:[#allocation12 + $0xf8] sm:$0xff] %v1961
    $region49: #{tpu_custom_call.1} parent=1 // pred_fallthru
      _
    // Predicated region
    $region50: #{tpu_custom_call.1} parent=1 // pred_check
      _
    $region51: #{tpu_custom_call.1} parent=1 // pred_check_branch
      %1995 = sbr.rel (0) target = $region53
    $region52: #{tpu_custom_call.1} parent=1 // pred_region
      %s1997 = ssub.s32 4096, 4096
      %1998 = vsyncadd [#allocation5], %s1997
      %s1999 = sshll.u32 [#allocation12], 4
      %s2000 = int_to_ptr.vmem [resolvable:$true] %s1999
      %2005 = dma.vmem_to_hbm [thread:$0]  %s2000, 4096, %s5, [#allocation5], 128, 128, 8
    $region53: #{tpu_custom_call.1} parent=1 // pred_fallthru
      _
    // Predicated region
    $region54: #{tpu_custom_call.1} parent=1 // pred_check
      _
    $region55: #{tpu_custom_call.1} parent=1 // pred_check_branch
      %2007 = sbr.rel (0) target = $region57
    $region56: #{tpu_custom_call.1} parent=1 // pred_region
      %2008 = dma.done [#allocation5], 4096
    $region57: #{tpu_custom_call.1} parent=1 // pred_fallthru
      _
    %2009 = vsyncpa [#allocation4], 1
    %2010 = vsyncpa [#allocation7], 1
    %2011 = vsyncpa [#allocation10], 1
    %2012 = vsyncpa [#allocation5], 1

</llo_original>
